<compile_context>
chip_gen: v7x
topology: tpu7x:2x2x1
jax: 0.10.0
libtpu: 0.0.40
codegen_flags: <defaults>
</compile_context>

<pallas_src>
import functools
import math

import jax
import jax.numpy as jnp
from jax.experimental import pallas as pl
from jax.experimental.pallas import tpu as pltpu

LANE = 128
ROW = 32                      # int8 sublane tiling granularity for A row tiles
TM_MAX = 512                  # dst-row tile (keep n_dst_p/TM >= 2 on v7x for 2 TCs)
TK_MAX = 4096                 # n_src reduction tile
VMEM_LIMIT = 40 * 1024 * 1024  # leaves headroom on v7x (64 MiB physical VMEM)


def _round_up(x, m):
    return ((x + m - 1) // m) * m


def _pad2(x, rows, cols, dtype=None):
    r, c = x.shape
    x = jnp.pad(x, ((0, rows - r), (0, cols - c)))
    return x if dtype is None else x.astype(dtype)


# --------------------------------------------------------------------------
# Kernel 1: feature transform  Y = X @ [W_neigh | W_self]
# --------------------------------------------------------------------------
def _transform_kernel(x_ref, w_ref, y_ref):
    y_ref[...] = jnp.dot(x_ref[...], w_ref[...],
                         preferred_element_type=jnp.float32).astype(y_ref.dtype)


def transform(x_p, w_p, *, tile):
    """x_p: [n_rows_p, f_in_p] bf16, w_p: [f_in_p, 2*f_out_p] bf16 -> bf16 Y."""
    n_rows, f_in_p = x_p.shape
    f2 = w_p.shape[1]
    return pl.pallas_call(
        _transform_kernel,
        out_shape=jax.ShapeDtypeStruct((n_rows, f2), jnp.bfloat16),
        grid_spec=pltpu.PrefetchScalarGridSpec(
            num_scalar_prefetch=0,
            grid=(n_rows // tile,),
            in_specs=[
                pl.BlockSpec((tile, f_in_p), lambda r: (r, 0)),
                pl.BlockSpec((f_in_p, f2), lambda r: (0, 0)),
            ],
            out_specs=pl.BlockSpec((tile, f2), lambda r: (r, 0)),
        ),
        compiler_params=pltpu.CompilerParams(
            dimension_semantics=("parallel",),
            vmem_limit_bytes=VMEM_LIMIT),
    )(x_p, w_p)


# --------------------------------------------------------------------------
# Kernel 2: neighborhood aggregation + epilogue
#   out = (sum_k A_ik @ Yn_k) * inv_deg_i + Ys_i + bias   (+ ReLU)
# --------------------------------------------------------------------------
def _agg_kernel(a_ref, yn_ref, ys_ref, inv_ref, b_ref, out_ref, acc_ref,
                *, apply_relu: bool):
    k = pl.program_id(1)

    @pl.when(k == 0)
    def _init():
        acc_ref[...] = jnp.zeros_like(acc_ref)

    # int8 binary adjacency -> bf16 on the VPU, big MXU contraction over n_src.
    a = a_ref[...].astype(jnp.bfloat16)
    acc_ref[...] += jnp.dot(a, yn_ref[...], preferred_element_type=jnp.float32)

    @pl.when(k == pl.num_programs(1) - 1)
    def _finalize():
        out = (acc_ref[...] * inv_ref[...]            # exact 1/deg mean
               + ys_ref[...].astype(jnp.float32)      # self transform (prefix rows)
               + b_ref[...])                          # bias, f32 epilogue
        if apply_relu:
            out = jnp.maximum(out, 0.0)
        out_ref[...] = out.astype(out_ref.dtype)


def aggregate(a_p, y_p, inv_p, b_p, *, tm, tk, apply_relu, out_dtype):
    """a_p: [n_dst_p, n_src_p] int8 binary adjacency; y_p: [n_src_p, 2*f_out_p]
    bf16 packed transform (neigh | self); inv_p: [n_dst_p, 1] f32 1/deg;
    b_p: [1, f_out_p] f32."""
    n_dst_p, n_src_p = a_p.shape
    f_out_p = y_p.shape[1] // 2
    grid = (n_dst_p // tm, n_src_p // tk)
    kernel = functools.partial(_agg_kernel, apply_relu=apply_relu)

    # NOTE: pipeline_mode=pl.Buffered(3) on the A spec can hide DMA jitter when
    # VMEM headroom remains (v5e/v6e); kept at the default depth here.
    return pl.pallas_call(
        kernel,
        out_shape=jax.ShapeDtypeStruct((n_dst_p, f_out_p), out_dtype),
        grid_spec=pltpu.PrefetchScalarGridSpec(
            num_scalar_prefetch=0,
            grid=grid,
            in_specs=[
                pl.BlockSpec((tm, tk), lambda i, k: (i, k)),        # A tile (int8)
                pl.BlockSpec((tk, f_out_p), lambda i, k: (k, 0)),   # Y neigh slab
                pl.BlockSpec((tm, f_out_p), lambda i, k: (i, 1)),   # Y self rows
                pl.BlockSpec((tm, 1), lambda i, k: (i, 0)),         # 1/deg
                pl.BlockSpec((1, f_out_p), lambda i, k: (0, 0)),    # bias
            ],
            out_specs=pl.BlockSpec((tm, f_out_p), lambda i, k: (i, 0)),
            scratch_shapes=[pltpu.VMEM((tm, f_out_p), jnp.float32)],
        ),
        compiler_params=pltpu.CompilerParams(
            dimension_semantics=("parallel", "arbitrary"),
            vmem_limit_bytes=VMEM_LIMIT),
    )(a_p, y_p, y_p, inv_p, b_p)


# --------------------------------------------------------------------------
# Wrapper: two-layer GraphSAGE forward (matches PyTorch Model.forward)
# --------------------------------------------------------------------------
def _inv_degree(adj, n_dst_p):
    deg = jnp.sum(adj.astype(jnp.float32), axis=1, keepdims=True)
    inv = jnp.where(deg > 0, 1.0 / deg, 0.0)      # zero-in-degree rows -> 0
    return jnp.pad(inv, ((0, n_dst_p - adj.shape[0]), (0, 0)))


def _pack_weights(w_neigh, w_self, f_in_p, f_out_p):
    wn = _pad2(w_neigh, f_in_p, f_out_p)
    ws = _pad2(w_self, f_in_p, f_out_p)
    return jnp.concatenate([wn, ws], axis=1).astype(jnp.bfloat16)


def model_forward(params, adj0, adj1, x):
    """adj0: [n_dst0, n_src0], adj1: [n_dst1, n_src1] binary (0/1) in-adjacency
    (dst node i has edge from src node j iff adj[i, j] == 1); x: [n_src0, in_feats]."""
    in_feats = x.shape[1]
    h_feats = params["w_neigh1"].shape[1]
    num_classes = params["w_neigh2"].shape[1]

    n_dst0, n_src0 = adj0.shape
    n_dst1, n_src1 = adj1.shape
    # DGL MFG invariants: dst nodes are a prefix of src nodes of the same block,
    # and layer-2 src nodes are exactly layer-1 dst nodes.
    assert n_src1 == n_dst0 and n_dst0 <= n_src0 and n_dst1 <= n_src1

    fin1_p = _round_up(in_feats, LANE)
    fout1_p = _round_up(h_feats, LANE)
    fout2_p = _round_up(num_classes, LANE)

    # ---- padded extents (layer 2 first so layer-1 output needs no repad) ----
    tm0 = min(TM_MAX, _round_up(n_dst0, ROW))
    tm1 = min(TM_MAX, _round_up(n_dst1, ROW))
    n_dst1_p = _round_up(n_dst1, tm1)
    tk1 = min(TK_MAX, _round_up(max(n_dst0, n_dst1_p), LANE))
    n_dst0_p = _round_up(max(n_dst0, n_dst1_p), math.lcm(tm0, tk1))
    n_src1_p = n_dst0_p                     # layer-1 out rows == layer-2 src rows
    n_rows0 = max(n_src0, n_dst0_p)         # dst rows must be a prefix of src rows
    tk0 = min(TK_MAX, _round_up(n_rows0, LANE))
    n_src0_p = _round_up(n_rows0, tk0)

    # ---------------- layer 1 (conv1 + fused ReLU) ----------------
    a0 = _pad2(adj0, n_dst0_p, n_src0_p, jnp.int8)
    inv0 = _inv_degree(adj0, n_dst0_p)
    x_p = _pad2(x, n_src0_p, fin1_p, jnp.bfloat16)
    w1 = _pack_weights(params["w_neigh1"], params["w_self1"], fin1_p, fout1_p)
    b1 = _pad2(params["b1"], 1, fout1_p, jnp.float32)

    y0 = transform(x_p, w1, tile=tk0)                       # [n_src0_p, 2*fout1_p]
    h = aggregate(a0, y0, inv0, b1, tm=tm0, tk=tk0,
                  apply_relu=True, out_dtype=jnp.bfloat16)  # [n_src1_p, fout1_p]
    # NOTE: padded dst rows of `h` may equal relu(b1) != 0; they are neutralized
    # because the corresponding (padded) columns of a1 are zero.

    # ---------------- layer 2 (conv2) ----------------
    a1 = _pad2(adj1, n_dst1_p, n_src1_p, jnp.int8)
    inv1 = _inv_degree(adj1, n_dst1_p)
    w2 = _pack_weights(params["w_neigh2"], params["w_self2"], fout1_p, fout2_p)
    b2 = _pad2(params["b2"], 1, fout2_p, jnp.float32)

    y1 = transform(h, w2, tile=tk1)                         # [n_src1_p, 2*fout2_p]
    out_p = aggregate(a1, y1, inv1, b2, tm=tm1, tk=tk1,
                      apply_relu=False, out_dtype=jnp.float32)

    return out_p[:n_dst1, :num_classes]


# --------------------------------------------------------------------------
# Demo / self-check
# --------------------------------------------------------------------------
def _make_block_adj(key, n_dst, n_src, p=0.3):
    """Binary int8 in-adjacency [n_dst, n_src]; every dst has >= 1 in-neighbor."""
    edges = jax.random.uniform(key, (n_dst, n_src)) < p
    eye = jnp.eye(n_dst, n_src, dtype=bool)
    return jnp.logical_or(edges, eye).astype(jnp.int8)


def _reference_forward(params, adj0, adj1, x):
    """Pure-JAX f32 reference (DGL SAGEConv 'mean' semantics)."""
    def sage(adj, h_src, wn, ws, b):
        a = adj.astype(jnp.float32)
        deg = jnp.sum(a, axis=1, keepdims=True)
        a = a / jnp.maximum(deg, 1.0)
        n_dst = adj.shape[0]
        return a @ h_src @ wn + h_src[:n_dst] @ ws + b
    h = jax.nn.relu(sage(adj0, x, params["w_neigh1"], params["w_self1"], params["b1"]))
    return sage(adj1, h, params["w_neigh2"], params["w_self2"], params["b2"])


if __name__ == "__main__":
    in_feats, h_feats, num_classes = 16, 32, 8
    n_src0, n_dst0 = 32, 16      # mfg[0]: 32 src nodes -> 16 dst nodes
    n_src1, n_dst1 = n_dst0, 8   # mfg[1]: 16 src nodes ->  8 dst nodes

    key = jax.random.PRNGKey(0)
    keys = jax.random.split(key, 8)

    x = jax.random.normal(keys[0], (n_src0, in_feats), dtype=jnp.float32)
    adj0 = _make_block_adj(keys[1], n_dst0, n_src0)
    adj1 = _make_block_adj(keys[2], n_dst1, n_src1)

    def glorot(k, shape):
        fan_in, fan_out = shape
        lim = (6.0 / (fan_in + fan_out)) ** 0.5
        return jax.random.uniform(k, shape, jnp.float32, -lim, lim)

    params = {
        "w_neigh1": glorot(keys[3], (in_feats, h_feats)),
        "w_self1":  glorot(keys[4], (in_feats, h_feats)),
        "b1":       jnp.zeros((1, h_feats), jnp.float32),
        "w_neigh2": glorot(keys[5], (h_feats, num_classes)),
        "w_self2":  glorot(keys[6], (h_feats, num_classes)),
        "b2":       jnp.zeros((1, num_classes), jnp.float32),
    }

    out = jax.jit(model_forward)(params, adj0, adj1, x)
    out = jax.block_until_ready(out)
    assert out.shape == (n_dst1, num_classes)
    assert bool(jnp.all(jnp.isfinite(out)))

    ref = _reference_forward(params, adj0, adj1, x)
    assert bool(jnp.allclose(out, ref, atol=5e-2, rtol=5e-2)), (
        float(jnp.max(jnp.abs(out - ref))))
    print("KERNEL_OK")
</pallas_src>

<mosaic_0001>
module attributes {stable_mosaic.version = 11 : i64} {
  func.func @_transform_kernel(%arg0: i32, %arg1: memref<128x128xbf16, #tpu.memory_space<vmem>>, %arg2: memref<128x256xbf16, #tpu.memory_space<vmem>>, %arg3: memref<128x256xbf16, #tpu.memory_space<vmem>>) attributes {dimension_semantics = [#tpu.dimension_semantics<parallel>], iteration_bounds = array<i64: 1>, scalar_prefetch = 0 : i64, scratch_operands = 0 : i64, tpu.core_type = #tpu.core_type<tc>, window_params = [{transform_indices = @transform_0, window_bounds = array<i64: 128, 128>}, {pipeline_mode = #tpu.pipeline_mode<synchronous>, transform_indices = @transform_1, window_bounds = array<i64: 128, 256>}, {transform_indices = @transform_2, window_bounds = array<i64: 128, 256>}]} {
    %c0 = arith.constant 0 : index
    %c0_0 = arith.constant 0 : index
    %0 = vector.load %arg1[%c0, %c0_0] : memref<128x128xbf16, #tpu.memory_space<vmem>>, vector<128x128xbf16>
    %c0_1 = arith.constant 0 : index
    %c0_2 = arith.constant 0 : index
    %1 = vector.load %arg2[%c0_1, %c0_2] : memref<128x256xbf16, #tpu.memory_space<vmem>>, vector<128x256xbf16>
    %cst = arith.constant dense<0.000000e+00> : vector<128x256xf32>
    %2 = tpu.matmul %0, %1, %cst {dimension_numbers = #tpu.dot_dimension_numbers<[1], [0], [0], [1], [0, 0, 1, 1], [], []>} : vector<128x128xbf16>, vector<128x256xbf16>, vector<128x256xf32> -> vector<128x256xf32>
    %3 = arith.truncf %2 : vector<128x256xf32> to vector<128x256xbf16>
    %c0_3 = arith.constant 0 : index
    %c0_4 = arith.constant 0 : index
    %4 = vector.load %arg3[%c0_3, %c0_4] : memref<128x256xbf16, #tpu.memory_space<vmem>>, vector<128x256xbf16>
    tpu.vector_store %arg3[%c0_3, %c0_4], %3 {strides = array<i32>} : memref<128x256xbf16, #tpu.memory_space<vmem>>, vector<128x256xbf16>,
    return
  }
  func.func @transform_0(%arg0: i32) -> (i32, i32) {
    %c0_i32 = arith.constant 0 : i32
    %c0_i32_0 = arith.constant 0 : i32
    return %arg0, %c0_i32 : i32, i32
  }
  func.func @transform_1(%arg0: i32) -> (i32, i32) {
    %c0_i32 = arith.constant 0 : i32
    %c0_i32_0 = arith.constant 0 : i32
    %c0_i32_1 = arith.constant 0 : i32
    return %c0_i32, %c0_i32_0 : i32, i32
  }
  func.func @transform_2(%arg0: i32) -> (i32, i32) {
    %c0_i32 = arith.constant 0 : i32
    %c0_i32_0 = arith.constant 0 : i32
    return %arg0, %c0_i32 : i32, i32
  }
}

module attributes {stable_mosaic.version = 11 : i64} {
  func.func @_agg_kernel(%arg0: i32, %arg1: i32, %arg2: memref<32x128xi8, #tpu.memory_space<vmem>>, %arg3: memref<128x128xbf16, #tpu.memory_space<vmem>>, %arg4: memref<32x128xbf16, #tpu.memory_space<vmem>>, %arg5: memref<32x1xf32, #tpu.memory_space<vmem>>, %arg6: memref<1x128xf32, #tpu.memory_space<vmem>>, %arg7: memref<32x128xbf16, #tpu.memory_space<vmem>>, %arg8: memref<32x128xf32, #tpu.memory_space<vmem>>) attributes {dimension_semantics = [#tpu.dimension_semantics<parallel>, #tpu.dimension_semantics<arbitrary>], iteration_bounds = array<i64: 4, 1>, scalar_prefetch = 0 : i64, scratch_operands = 1 : i64, tpu.core_type = #tpu.core_type<tc>, window_params = [{transform_indices = @transform_0, window_bounds = array<i64: 32, 128>}, {transform_indices = @transform_1, window_bounds = array<i64: 128, 128>}, {transform_indices = @transform_2, window_bounds = array<i64: 32, 128>}, {transform_indices = @transform_3, window_bounds = array<i64: 32, 1>}, {pipeline_mode = #tpu.pipeline_mode<synchronous>, transform_indices = @transform_4, window_bounds = array<i64: 1, 128>}, {transform_indices = @transform_5, window_bounds = array<i64: 32, 128>}]} {
    %c0_i32 = arith.constant 0 : i32
    %0 = arith.cmpi eq, %arg1, %c0_i32 : i32
    %1 = arith.extui %0 : i1 to i32
    %c0_i32_0 = arith.constant 0 : i32
    %2 = arith.cmpi ne, %1, %c0_i32_0 : i32
    scf.if %2 {
      %cst_10 = arith.constant 0.000000e+00 : f32
      %13 = vector.broadcast %cst_10 : f32 to vector<32x128xf32>
      %c0_11 = arith.constant 0 : index
      %c0_12 = arith.constant 0 : index
      %14 = vector.load %arg8[%c0_11, %c0_12] : memref<32x128xf32, #tpu.memory_space<vmem>>, vector<32x128xf32>
      tpu.vector_store %arg8[%c0_11, %c0_12], %13 {strides = array<i32>} : memref<32x128xf32, #tpu.memory_space<vmem>>, vector<32x128xf32>,
    } else {
    }
    %c0 = arith.constant 0 : index
    %c0_1 = arith.constant 0 : index
    %3 = vector.load %arg2[%c0, %c0_1] : memref<32x128xi8, #tpu.memory_space<vmem>>, vector<32x128xi8>
    %4 = arith.sitofp %3 : vector<32x128xi8> to vector<32x128xbf16>
    %c0_2 = arith.constant 0 : index
    %c0_3 = arith.constant 0 : index
    %5 = vector.load %arg8[%c0_2, %c0_3] : memref<32x128xf32, #tpu.memory_space<vmem>>, vector<32x128xf32>
    %c0_4 = arith.constant 0 : index
    %c0_5 = arith.constant 0 : index
    %6 = vector.load %arg3[%c0_4, %c0_5] : memref<128x128xbf16, #tpu.memory_space<vmem>>, vector<128x128xbf16>
    %cst = arith.constant dense<0.000000e+00> : vector<32x128xf32>
    %7 = tpu.matmul %4, %6, %cst {dimension_numbers = #tpu.dot_dimension_numbers<[1], [0], [0], [1], [0, 0, 1, 1], [], []>} : vector<32x128xbf16>, vector<128x128xbf16>, vector<32x128xf32> -> vector<32x128xf32>
    %8 = arith.addf %5, %7 : vector<32x128xf32>
    %c0_6 = arith.constant 0 : index
    %c0_7 = arith.constant 0 : index
    %9 = vector.load %arg8[%c0_6, %c0_7] : memref<32x128xf32, #tpu.memory_space<vmem>>, vector<32x128xf32>
    tpu.vector_store %arg8[%c0_6, %c0_7], %8 {strides = array<i32>} : memref<32x128xf32, #tpu.memory_space<vmem>>, vector<32x128xf32>,
    %c0_i32_8 = arith.constant 0 : i32
    %10 = arith.cmpi eq, %arg1, %c0_i32_8 : i32
    %11 = arith.extui %10 : i1 to i32
    %c0_i32_9 = arith.constant 0 : i32
    %12 = arith.cmpi ne, %11, %c0_i32_9 : i32
    scf.if %12 {
      %c0_10 = arith.constant 0 : index
      %c0_11 = arith.constant 0 : index
      %13 = vector.load %arg8[%c0_10, %c0_11] : memref<32x128xf32, #tpu.memory_space<vmem>>, vector<32x128xf32>
      %c0_12 = arith.constant 0 : index
      %c0_13 = arith.constant 0 : index
      %14 = vector.load %arg5[%c0_12, %c0_13] : memref<32x1xf32, #tpu.memory_space<vmem>>, vector<32x1xf32>
      %15 = vector.broadcast %14 : vector<32x1xf32> to vector<32x128xf32>
      %16 = arith.mulf %13, %15 : vector<32x128xf32>
      %c0_14 = arith.constant 0 : index
      %c0_15 = arith.constant 0 : index
      %17 = vector.load %arg4[%c0_14, %c0_15] : memref<32x128xbf16, #tpu.memory_space<vmem>>, vector<32x128xbf16>
      %18 = arith.extf %17 : vector<32x128xbf16> to vector<32x128xf32>
      %19 = arith.addf %16, %18 : vector<32x128xf32>
      %c0_16 = arith.constant 0 : index
      %c0_17 = arith.constant 0 : index
      %20 = vector.load %arg6[%c0_16, %c0_17] : memref<1x128xf32, #tpu.memory_space<vmem>>, vector<1x128xf32>
      %21 = vector.broadcast %20 : vector<1x128xf32> to vector<32x128xf32>
      %22 = arith.addf %19, %21 : vector<32x128xf32>
      %cst_18 = arith.constant 0.000000e+00 : f32
      %23 = vector.broadcast %cst_18 : f32 to vector<32x128xf32>
      %24 = arith.maximumf %22, %23 : vector<32x128xf32>
      %25 = arith.truncf %24 : vector<32x128xf32> to vector<32x128xbf16>
      %c0_19 = arith.constant 0 : index
      %c0_20 = arith.constant 0 : index
      %26 = vector.load %arg7[%c0_19, %c0_20] : memref<32x128xbf16, #tpu.memory_space<vmem>>, vector<32x128xbf16>
      tpu.vector_store %arg7[%c0_19, %c0_20], %25 {strides = array<i32>} : memref<32x128xbf16, #tpu.memory_space<vmem>>, vector<32x128xbf16>,
    } else {
    }
    return
  }
  func.func @transform_0(%arg0: i32, %arg1: i32) -> (i32, i32) {
    %c0_i32 = arith.constant 0 : i32
    return %arg0, %arg1 : i32, i32
  }
  func.func @transform_1(%arg0: i32, %arg1: i32) -> (i32, i32) {
    %c0_i32 = arith.constant 0 : i32
    %c0_i32_0 = arith.constant 0 : i32
    return %arg1, %c0_i32 : i32, i32
  }
  func.func @transform_2(%arg0: i32, %arg1: i32) -> (i32, i32) {
    %c1_i32 = arith.constant 1 : i32
    %c0_i32 = arith.constant 0 : i32
    return %arg0, %c1_i32 : i32, i32
  }
  func.func @transform_3(%arg0: i32, %arg1: i32) -> (i32, i32) {
    %c0_i32 = arith.constant 0 : i32
    %c0_i32_0 = arith.constant 0 : i32
    return %arg0, %c0_i32 : i32, i32
  }
  func.func @transform_4(%arg0: i32, %arg1: i32) -> (i32, i32) {
    %c0_i32 = arith.constant 0 : i32
    %c0_i32_0 = arith.constant 0 : i32
    %c0_i32_1 = arith.constant 0 : i32
    return %c0_i32, %c0_i32_0 : i32, i32
  }
  func.func @transform_5(%arg0: i32, %arg1: i32) -> (i32, i32) {
    %c0_i32 = arith.constant 0 : i32
    %c0_i32_0 = arith.constant 0 : i32
    return %arg0, %c0_i32 : i32, i32
  }
}

module attributes {stable_mosaic.version = 11 : i64} {
  func.func @_agg_kernel(%arg0: i32, %arg1: i32, %arg2: memref<32x128xi8, #tpu.memory_space<vmem>>, %arg3: memref<128x128xbf16, #tpu.memory_space<vmem>>, %arg4: memref<32x128xbf16, #tpu.memory_space<vmem>>, %arg5: memref<32x1xf32, #tpu.memory_space<vmem>>, %arg6: memref<1x128xf32, #tpu.memory_space<vmem>>, %arg7: memref<32x128xf32, #tpu.memory_space<vmem>>, %arg8: memref<32x128xf32, #tpu.memory_space<vmem>>) attributes {dimension_semantics = [#tpu.dimension_semantics<parallel>, #tpu.dimension_semantics<arbitrary>], iteration_bounds = array<i64: 1, 1>, scalar_prefetch = 0 : i64, scratch_operands = 1 : i64, tpu.core_type = #tpu.core_type<tc>, window_params = [{transform_indices = @transform_0, window_bounds = array<i64: 32, 128>}, {transform_indices = @transform_1, window_bounds = array<i64: 128, 128>}, {transform_indices = @transform_2, window_bounds = array<i64: 32, 128>}, {transform_indices = @transform_3, window_bounds = array<i64: 32, 1>}, {pipeline_mode = #tpu.pipeline_mode<synchronous>, transform_indices = @transform_4, window_bounds = array<i64: 1, 128>}, {transform_indices = @transform_5, window_bounds = array<i64: 32, 128>}]} {
    %c0_i32 = arith.constant 0 : i32
    %0 = arith.cmpi eq, %arg1, %c0_i32 : i32
    %1 = arith.extui %0 : i1 to i32
    %c0_i32_0 = arith.constant 0 : i32
    %2 = arith.cmpi ne, %1, %c0_i32_0 : i32
    scf.if %2 {
      %cst_10 = arith.constant 0.000000e+00 : f32
      %13 = vector.broadcast %cst_10 : f32 to vector<32x128xf32>
      %c0_11 = arith.constant 0 : index
      %c0_12 = arith.constant 0 : index
      %14 = vector.load %arg8[%c0_11, %c0_12] : memref<32x128xf32, #tpu.memory_space<vmem>>, vector<32x128xf32>
      tpu.vector_store %arg8[%c0_11, %c0_12], %13 {strides = array<i32>} : memref<32x128xf32, #tpu.memory_space<vmem>>, vector<32x128xf32>,
    } else {
    }
    %c0 = arith.constant 0 : index
    %c0_1 = arith.constant 0 : index
    %3 = vector.load %arg2[%c0, %c0_1] : memref<32x128xi8, #tpu.memory_space<vmem>>, vector<32x128xi8>
    %4 = arith.sitofp %3 : vector<32x128xi8> to vector<32x128xbf16>
    %c0_2 = arith.constant 0 : index
    %c0_3 = arith.constant 0 : index
    %5 = vector.load %arg8[%c0_2, %c0_3] : memref<32x128xf32, #tpu.memory_space<vmem>>, vector<32x128xf32>
    %c0_4 = arith.constant 0 : index
    %c0_5 = arith.constant 0 : index
    %6 = vector.load %arg3[%c0_4, %c0_5] : memref<128x128xbf16, #tpu.memory_space<vmem>>, vector<128x128xbf16>
    %cst = arith.constant dense<0.000000e+00> : vector<32x128xf32>
    %7 = tpu.matmul %4, %6, %cst {dimension_numbers = #tpu.dot_dimension_numbers<[1], [0], [0], [1], [0, 0, 1, 1], [], []>} : vector<32x128xbf16>, vector<128x128xbf16>, vector<32x128xf32> -> vector<32x128xf32>
    %8 = arith.addf %5, %7 : vector<32x128xf32>
    %c0_6 = arith.constant 0 : index
    %c0_7 = arith.constant 0 : index
    %9 = vector.load %arg8[%c0_6, %c0_7] : memref<32x128xf32, #tpu.memory_space<vmem>>, vector<32x128xf32>
    tpu.vector_store %arg8[%c0_6, %c0_7], %8 {strides = array<i32>} : memref<32x128xf32, #tpu.memory_space<vmem>>, vector<32x128xf32>,
    %c0_i32_8 = arith.constant 0 : i32
    %10 = arith.cmpi eq, %arg1, %c0_i32_8 : i32
    %11 = arith.extui %10 : i1 to i32
    %c0_i32_9 = arith.constant 0 : i32
    %12 = arith.cmpi ne, %11, %c0_i32_9 : i32
    scf.if %12 {
      %c0_10 = arith.constant 0 : index
      %c0_11 = arith.constant 0 : index
      %13 = vector.load %arg8[%c0_10, %c0_11] : memref<32x128xf32, #tpu.memory_space<vmem>>, vector<32x128xf32>
      %c0_12 = arith.constant 0 : index
      %c0_13 = arith.constant 0 : index
      %14 = vector.load %arg5[%c0_12, %c0_13] : memref<32x1xf32, #tpu.memory_space<vmem>>, vector<32x1xf32>
      %15 = vector.broadcast %14 : vector<32x1xf32> to vector<32x128xf32>
      %16 = arith.mulf %13, %15 : vector<32x128xf32>
      %c0_14 = arith.constant 0 : index
      %c0_15 = arith.constant 0 : index
      %17 = vector.load %arg4[%c0_14, %c0_15] : memref<32x128xbf16, #tpu.memory_space<vmem>>, vector<32x128xbf16>
      %18 = arith.extf %17 : vector<32x128xbf16> to vector<32x128xf32>
      %19 = arith.addf %16, %18 : vector<32x128xf32>
      %c0_16 = arith.constant 0 : index
      %c0_17 = arith.constant 0 : index
      %20 = vector.load %arg6[%c0_16, %c0_17] : memref<1x128xf32, #tpu.memory_space<vmem>>, vector<1x128xf32>
      %21 = vector.broadcast %20 : vector<1x128xf32> to vector<32x128xf32>
      %22 = arith.addf %19, %21 : vector<32x128xf32>
      %c0_18 = arith.constant 0 : index
      %c0_19 = arith.constant 0 : index
      %23 = vector.load %arg7[%c0_18, %c0_19] : memref<32x128xf32, #tpu.memory_space<vmem>>, vector<32x128xf32>
      tpu.vector_store %arg7[%c0_18, %c0_19], %22 {strides = array<i32>} : memref<32x128xf32, #tpu.memory_space<vmem>>, vector<32x128xf32>,
    } else {
    }
    return
  }
  func.func @transform_0(%arg0: i32, %arg1: i32) -> (i32, i32) {
    %c0_i32 = arith.constant 0 : i32
    return %arg0, %arg1 : i32, i32
  }
  func.func @transform_1(%arg0: i32, %arg1: i32) -> (i32, i32) {
    %c0_i32 = arith.constant 0 : i32
    %c0_i32_0 = arith.constant 0 : i32
    return %arg1, %c0_i32 : i32, i32
  }
  func.func @transform_2(%arg0: i32, %arg1: i32) -> (i32, i32) {
    %c1_i32 = arith.constant 1 : i32
    %c0_i32 = arith.constant 0 : i32
    return %arg0, %c1_i32 : i32, i32
  }
  func.func @transform_3(%arg0: i32, %arg1: i32) -> (i32, i32) {
    %c0_i32 = arith.constant 0 : i32
    %c0_i32_0 = arith.constant 0 : i32
    return %arg0, %c0_i32 : i32, i32
  }
  func.func @transform_4(%arg0: i32, %arg1: i32) -> (i32, i32) {
    %c0_i32 = arith.constant 0 : i32
    %c0_i32_0 = arith.constant 0 : i32
    %c0_i32_1 = arith.constant 0 : i32
    return %c0_i32, %c0_i32_0 : i32, i32
  }
  func.func @transform_5(%arg0: i32, %arg1: i32) -> (i32, i32) {
    %c0_i32 = arith.constant 0 : i32
    %c0_i32_0 = arith.constant 0 : i32
    return %arg0, %c0_i32 : i32, i32
  }
}

</mosaic_0001>

<llo_original>
// kernel: model_forward.4
$region0: #{model_forward.4}
  #allocation0 [shape = 'u32[]', space=smem, size = 0x4, offset = 0x4, fixed_abs, tag = 'smem constant byte address 0x4 - core index']
  #allocation1 [shape = 'u32[144,128]{1,0:T(1,128)}', space=vmem, size = 0x12000, scoped, tag = 'internal scratch']
  %s0 = inlined_call_operand.vmem [shape: bf16[128,128], index: 0, kind: input, shape index: {}]
  %s1 = inlined_call_operand.vmem [shape: bf16[128,256], index: 1, kind: input, shape index: {}]
  %s2 = inlined_call_operand.vmem [shape: bf16[128,256], index: 2, kind: output, shape index: {}]
  %s3 = sld [smem:[#allocation0]]
  $region18: #{model_forward.4} parent=0
    _
  %s5 = ssub.s32 1, %s3
  %s6 = scalar_select 0, %s5, %s3
  // Predicated region
  $region2: #{model_forward.4} parent=0 // pred_check
    _
  $region3: #{model_forward.4} parent=0 // pred_check_branch
    %8 = sbr.rel (0) target = $region5
  $region4: #{model_forward.4} parent=0 // pred_region
    _
  $region5: #{model_forward.4} parent=0 // pred_fallthru
    _
  // Predicated region
  $region6: #{model_forward.4} parent=0 // pred_check
    _
  $region7: #{model_forward.4} parent=0 // pred_check_branch
    %10 = sbr.rel (0) target = $region9
  $region8: #{model_forward.4} parent=0 // pred_region
    _
  $region9: #{model_forward.4} parent=0 // pred_fallthru
    _
  %v12 = vld [vmem:[%s0] sm:$0xf]
  %v13 = vld [vmem:[%s0 + $0x4] sm:$0xf]
  %v14 = vld [vmem:[%s0 + $0x8] sm:$0xf]
  %v15 = vld [vmem:[%s0 + $0xc] sm:$0xf]
  %v16 = vld [vmem:[%s0 + $0x10] sm:$0xf]
  %v17 = vld [vmem:[%s0 + $0x14] sm:$0xf]
  %v18 = vld [vmem:[%s0 + $0x18] sm:$0xf]
  %v19 = vld [vmem:[%s0 + $0x1c] sm:$0xf]
  %v20 = vld [vmem:[%s0 + $0x20] sm:$0xf]
  %v21 = vld [vmem:[%s0 + $0x24] sm:$0xf]
  %v22 = vld [vmem:[%s0 + $0x28] sm:$0xf]
  %v23 = vld [vmem:[%s0 + $0x2c] sm:$0xf]
  %v24 = vld [vmem:[%s0 + $0x30] sm:$0xf]
  %v25 = vld [vmem:[%s0 + $0x34] sm:$0xf]
  %v26 = vld [vmem:[%s0 + $0x38] sm:$0xf]
  %v27 = vld [vmem:[%s0 + $0x3c] sm:$0xf]
  %v28 = vld [vmem:[%s1] sm:$0xff]
  %v29 = vld [vmem:[%s1 + $0x8] sm:$0xff]
  %v30 = vld [vmem:[%s1 + $0x10] sm:$0xff]
  %v31 = vld [vmem:[%s1 + $0x18] sm:$0xff]
  %v32 = vld [vmem:[%s1 + $0x20] sm:$0xff]
  %v33 = vld [vmem:[%s1 + $0x28] sm:$0xff]
  %v34 = vld [vmem:[%s1 + $0x30] sm:$0xff]
  %v35 = vld [vmem:[%s1 + $0x38] sm:$0xff]
  %v36 = vld [vmem:[%s1 + $0x40] sm:$0xff]
  %v37 = vld [vmem:[%s1 + $0x48] sm:$0xff]
  %v38 = vld [vmem:[%s1 + $0x50] sm:$0xff]
  %v39 = vld [vmem:[%s1 + $0x58] sm:$0xff]
  %v40 = vld [vmem:[%s1 + $0x60] sm:$0xff]
  %v41 = vld [vmem:[%s1 + $0x68] sm:$0xff]
  %v42 = vld [vmem:[%s1 + $0x70] sm:$0xff]
  %v43 = vld [vmem:[%s1 + $0x78] sm:$0xff]
  %v60 = vunpack.c.l.b16 %v12
  %v61 = vunpack.c.l.b16 %v13
  %v62 = vunpack.c.l.b16 %v14
  %v63 = vunpack.c.l.b16 %v15
  %v64 = vunpack.c.l.b16 %v16
  %v65 = vunpack.c.l.b16 %v17
  %v66 = vunpack.c.l.b16 %v18
  %v67 = vunpack.c.l.b16 %v19
  %v68 = vunpack.c.l.b16 %v20
  %v69 = vunpack.c.l.b16 %v21
  %v70 = vunpack.c.l.b16 %v22
  %v71 = vunpack.c.l.b16 %v23
  %v72 = vunpack.c.l.b16 %v24
  %v73 = vunpack.c.l.b16 %v25
  %v74 = vunpack.c.l.b16 %v26
  %v75 = vunpack.c.l.b16 %v27
  %v76 = vpack.c.b16 %v61, %v60
  %v77 = vpack.c.b16 %v63, %v62
  %v78 = vpack.c.b16 %v65, %v64
  %v79 = vpack.c.b16 %v67, %v66
  %v80 = vpack.c.b16 %v69, %v68
  %v81 = vpack.c.b16 %v71, %v70
  %v82 = vpack.c.b16 %v73, %v72
  %v83 = vpack.c.b16 %v75, %v74
  %v108 = vunpack.c.l.b16 %v28
  %v109 = vunpack.c.h.b16 %v28
  %v110 = vunpack.c.l.b16 %v29
  %v111 = vunpack.c.h.b16 %v29
  %v112 = vunpack.c.l.b16 %v30
  %v113 = vunpack.c.h.b16 %v30
  %v114 = vunpack.c.l.b16 %v31
  %v115 = vunpack.c.h.b16 %v31
  %v116 = vunpack.c.l.b16 %v32
  %v117 = vunpack.c.h.b16 %v32
  %v118 = vunpack.c.l.b16 %v33
  %v119 = vunpack.c.h.b16 %v33
  %v120 = vunpack.c.l.b16 %v34
  %v121 = vunpack.c.h.b16 %v34
  %v122 = vunpack.c.l.b16 %v35
  %v123 = vunpack.c.h.b16 %v35
  %v124 = vunpack.c.l.b16 %v36
  %v125 = vunpack.c.h.b16 %v36
  %v126 = vunpack.c.l.b16 %v37
  %v127 = vunpack.c.h.b16 %v37
  %v128 = vunpack.c.l.b16 %v38
  %v129 = vunpack.c.h.b16 %v38
  %v130 = vunpack.c.l.b16 %v39
  %v131 = vunpack.c.h.b16 %v39
  %v132 = vunpack.c.l.b16 %v40
  %v133 = vunpack.c.h.b16 %v40
  %v134 = vunpack.c.l.b16 %v41
  %v135 = vunpack.c.h.b16 %v41
  %v136 = vunpack.c.l.b16 %v42
  %v137 = vunpack.c.h.b16 %v42
  %v138 = vunpack.c.l.b16 %v43
  %v139 = vunpack.c.h.b16 %v43
  %v140 = vpack.c.b16 %v110, %v108
  %v141 = vpack.c.b16 %v111, %v109
  %v142 = vpack.c.b16 %v114, %v112
  %v143 = vpack.c.b16 %v115, %v113
  %v144 = vpack.c.b16 %v118, %v116
  %v145 = vpack.c.b16 %v119, %v117
  %v146 = vpack.c.b16 %v122, %v120
  %v147 = vpack.c.b16 %v123, %v121
  %v148 = vpack.c.b16 %v126, %v124
  %v149 = vpack.c.b16 %v127, %v125
  %v150 = vpack.c.b16 %v130, %v128
  %v151 = vpack.c.b16 %v131, %v129
  %v152 = vpack.c.b16 %v134, %v132
  %v153 = vpack.c.b16 %v135, %v133
  %v154 = vpack.c.b16 %v138, %v136
  %v155 = vpack.c.b16 %v139, %v137
  %172 = vmatprep.subr.bf16.mxu0 %v141
  %173 = vmatpush1.bf16.msra.mxu0 %v140
  %174 = vmatprep.subr.bf16.mxu0 %v143
  %175 = vmatpush1.bf16.msra.mxu0 %v142
  %176 = vmatprep.subr.bf16.mxu0 %v145
  %177 = vmatpush1.bf16.msra.mxu0 %v144
  %178 = vmatprep.subr.bf16.mxu0 %v147
  %179 = vmatpush1.bf16.msra.mxu0 %v146
  %180 = vmatprep.subr.bf16.mxu0 %v149
  %181 = vmatpush1.bf16.msra.mxu0 %v148
  %182 = vmatprep.subr.bf16.mxu0 %v151
  %183 = vmatpush1.bf16.msra.mxu0 %v150
  %184 = vmatprep.subr.bf16.mxu0 %v153
  %185 = vmatpush1.bf16.msra.mxu0 %v152
  %186 = vmatprep.subr.bf16.mxu0 %v155
  %187 = vmatpush1.bf16.msra.mxu0 %v154
  %188 = vmatprep.subr.bf16.mxu0 0
  %189 = vmatpush1.bf16.msra.mxu0 0
  %190 = vmatprep.subr.bf16.mxu0 0
  %191 = vmatpush1.bf16.msra.mxu0 0
  %192 = vmatprep.subr.bf16.mxu0 0
  %193 = vmatpush1.bf16.msra.mxu0 0
  %194 = vmatprep.subr.bf16.mxu0 0
  %195 = vmatpush1.bf16.msra.mxu0 0
  %196 = vmatprep.subr.bf16.mxu0 0
  %197 = vmatpush1.bf16.msra.mxu0 0
  %198 = vmatprep.subr.bf16.mxu0 0
  %199 = vmatpush1.bf16.msra.mxu0 0
  %200 = vmatprep.subr.bf16.mxu0 0
  %201 = vmatpush1.bf16.msra.mxu0 0
  %202 = vmatprep.subr.bf16.mxu0 0
  %203 = vmatpush1.bf16.msra.mxu0 0
  %204 = vmatprep.mubr.bf16.mxu0 0
  %205 = vmatmul.mubr.bf16.gmra.mrb[0].mxu0 %v76
  %v206 = vpop.f32.mrb[0].mxu0
  %v207 = vadd.f32 0.0, %v206
  %v208 = vpop.f32.mrb[0].mxu0
  %v209 = vadd.f32 0.0, %v208
  %v210 = vpop.f32.mrb[0].mxu0
  %v211 = vadd.f32 0.0, %v210
  %v212 = vpop.f32.mrb[0].mxu0
  %v213 = vadd.f32 0.0, %v212
  %214 = vmatprep.mubr.bf16.mxu0 0
  %215 = vmatmul.mubr.bf16.gmra.mrb[0].mxu0 %v77
  %v216 = vpop.f32.mrb[0].mxu0
  %v217 = vadd.f32 0.0, %v216
  %v218 = vpop.f32.mrb[0].mxu0
  %v219 = vadd.f32 0.0, %v218
  %v220 = vpop.f32.mrb[0].mxu0
  %v221 = vadd.f32 0.0, %v220
  %v222 = vpop.f32.mrb[0].mxu0
  %v223 = vadd.f32 0.0, %v222
  %224 = vmatprep.mubr.bf16.mxu0 0
  %225 = vmatmul.mubr.bf16.gmra.mrb[0].mxu0 %v78
  %v226 = vpop.f32.mrb[0].mxu0
  %v227 = vadd.f32 0.0, %v226
  %v228 = vpop.f32.mrb[0].mxu0
  %v229 = vadd.f32 0.0, %v228
  %v230 = vpop.f32.mrb[0].mxu0
  %v231 = vadd.f32 0.0, %v230
  %v232 = vpop.f32.mrb[0].mxu0
  %v233 = vadd.f32 0.0, %v232
  %234 = vmatprep.mubr.bf16.mxu0 0
  %235 = vmatmul.mubr.bf16.gmra.mrb[0].mxu0 %v79
  %v236 = vpop.f32.mrb[0].mxu0
  %v237 = vadd.f32 0.0, %v236
  %v238 = vpop.f32.mrb[0].mxu0
  %v239 = vadd.f32 0.0, %v238
  %v240 = vpop.f32.mrb[0].mxu0
  %v241 = vadd.f32 0.0, %v240
  %v242 = vpop.f32.mrb[0].mxu0
  %v243 = vadd.f32 0.0, %v242
  %244 = vmatprep.mubr.bf16.mxu0 0
  %245 = vmatmul.mubr.bf16.gmra.mrb[0].mxu0 %v80
  %v246 = vpop.f32.mrb[0].mxu0
  %v247 = vadd.f32 0.0, %v246
  %v248 = vpop.f32.mrb[0].mxu0
  %v249 = vadd.f32 0.0, %v248
  %v250 = vpop.f32.mrb[0].mxu0
  %v251 = vadd.f32 0.0, %v250
  %v252 = vpop.f32.mrb[0].mxu0
  %v253 = vadd.f32 0.0, %v252
  %254 = vmatprep.mubr.bf16.mxu0 0
  %255 = vmatmul.mubr.bf16.gmra.mrb[0].mxu0 %v81
  %v256 = vpop.f32.mrb[0].mxu0
  %v257 = vadd.f32 0.0, %v256
  %v258 = vpop.f32.mrb[0].mxu0
  %v259 = vadd.f32 0.0, %v258
  %v260 = vpop.f32.mrb[0].mxu0
  %v261 = vadd.f32 0.0, %v260
  %v262 = vpop.f32.mrb[0].mxu0
  %v263 = vadd.f32 0.0, %v262
  %264 = vmatprep.mubr.bf16.mxu0 0
  %265 = vmatmul.mubr.bf16.gmra.mrb[0].mxu0 %v82
  %v266 = vpop.f32.mrb[0].mxu0
  %v267 = vadd.f32 0.0, %v266
  %v268 = vpop.f32.mrb[0].mxu0
  %v269 = vadd.f32 0.0, %v268
  %v270 = vpop.f32.mrb[0].mxu0
  %v271 = vadd.f32 0.0, %v270
  %v272 = vpop.f32.mrb[0].mxu0
  %v273 = vadd.f32 0.0, %v272
  %274 = vmatprep.mubr.bf16.mxu0 0
  %275 = vmatmul.mubr.bf16.gmra.mrb[0].mxu0 %v83
  %v276 = vpop.f32.mrb[0].mxu0
  %v277 = vadd.f32 0.0, %v276
  %v278 = vpop.f32.mrb[0].mxu0
  %v279 = vadd.f32 0.0, %v278
  %v280 = vpop.f32.mrb[0].mxu0
  %v281 = vadd.f32 0.0, %v280
  %v282 = vpop.f32.mrb[0].mxu0
  %v283 = vadd.f32 0.0, %v282
  %284 = vdwg.mxu0
  %v285 = vpack.c.bf16 %v211, %v207
  %v286 = vpack.c.bf16 %v213, %v209
  %v287 = vpack.c.bf16 %v221, %v217
  %v288 = vpack.c.bf16 %v223, %v219
  %v289 = vpack.c.bf16 %v231, %v227
  %v290 = vpack.c.bf16 %v233, %v229
  %v291 = vpack.c.bf16 %v241, %v237
  %v292 = vpack.c.bf16 %v243, %v239
  %v293 = vpack.c.bf16 %v251, %v247
  %v294 = vpack.c.bf16 %v253, %v249
  %v295 = vpack.c.bf16 %v261, %v257
  %v296 = vpack.c.bf16 %v263, %v259
  %v297 = vpack.c.bf16 %v271, %v267
  %v298 = vpack.c.bf16 %v273, %v269
  %v299 = vpack.c.bf16 %v281, %v277
  %v300 = vpack.c.bf16 %v283, %v279
  %v317 = vunpack.c.l.b16 %v285
  %v318 = vunpack.c.l.b16 %v286
  %v319 = vunpack.c.h.b16 %v285
  %v320 = vunpack.c.h.b16 %v286
  %v321 = vunpack.c.l.b16 %v287
  %v322 = vunpack.c.l.b16 %v288
  %v323 = vunpack.c.h.b16 %v287
  %v324 = vunpack.c.h.b16 %v288
  %v325 = vunpack.c.l.b16 %v289
  %v326 = vunpack.c.l.b16 %v290
  %v327 = vunpack.c.h.b16 %v289
  %v328 = vunpack.c.h.b16 %v290
  %v329 = vunpack.c.l.b16 %v291
  %v330 = vunpack.c.l.b16 %v292
  %v331 = vunpack.c.h.b16 %v291
  %v332 = vunpack.c.h.b16 %v292
  %v333 = vunpack.c.l.b16 %v293
  %v334 = vunpack.c.l.b16 %v294
  %v335 = vunpack.c.h.b16 %v293
  %v336 = vunpack.c.h.b16 %v294
  %v337 = vunpack.c.l.b16 %v295
  %v338 = vunpack.c.l.b16 %v296
  %v339 = vunpack.c.h.b16 %v295
  %v340 = vunpack.c.h.b16 %v296
  %v341 = vunpack.c.l.b16 %v297
  %v342 = vunpack.c.l.b16 %v298
  %v343 = vunpack.c.h.b16 %v297
  %v344 = vunpack.c.h.b16 %v298
  %v345 = vunpack.c.l.b16 %v299
  %v346 = vunpack.c.l.b16 %v300
  %v347 = vunpack.c.h.b16 %v299
  %v348 = vunpack.c.h.b16 %v300
  %v349 = vpack.c.b16 %v318, %v317
  %v350 = vpack.c.b16 %v320, %v319
  %v351 = vpack.c.b16 %v322, %v321
  %v352 = vpack.c.b16 %v324, %v323
  %v353 = vpack.c.b16 %v326, %v325
  %v354 = vpack.c.b16 %v328, %v327
  %v355 = vpack.c.b16 %v330, %v329
  %v356 = vpack.c.b16 %v332, %v331
  %v357 = vpack.c.b16 %v334, %v333
  %v358 = vpack.c.b16 %v336, %v335
  %v359 = vpack.c.b16 %v338, %v337
  %v360 = vpack.c.b16 %v340, %v339
  %v361 = vpack.c.b16 %v342, %v341
  %v362 = vpack.c.b16 %v344, %v343
  %v363 = vpack.c.b16 %v346, %v345
  %v364 = vpack.c.b16 %v348, %v347
  %381 = vst [vmem:[%s2] sm:$0xff] %v349
  %382 = vst [vmem:[%s2 + $0x8] sm:$0xff] %v350
  %383 = vst [vmem:[%s2 + $0x10] sm:$0xff] %v351
  %384 = vst [vmem:[%s2 + $0x18] sm:$0xff] %v352
  %385 = vst [vmem:[%s2 + $0x20] sm:$0xff] %v353
  %386 = vst [vmem:[%s2 + $0x28] sm:$0xff] %v354
  %387 = vst [vmem:[%s2 + $0x30] sm:$0xff] %v355
  %388 = vst [vmem:[%s2 + $0x38] sm:$0xff] %v356
  %389 = vst [vmem:[%s2 + $0x40] sm:$0xff] %v357
  %390 = vst [vmem:[%s2 + $0x48] sm:$0xff] %v358
  %391 = vst [vmem:[%s2 + $0x50] sm:$0xff] %v359
  %392 = vst [vmem:[%s2 + $0x58] sm:$0xff] %v360
  %393 = vst [vmem:[%s2 + $0x60] sm:$0xff] %v361
  %394 = vst [vmem:[%s2 + $0x68] sm:$0xff] %v362
  %395 = vst [vmem:[%s2 + $0x70] sm:$0xff] %v363
  %396 = vst [vmem:[%s2 + $0x78] sm:$0xff] %v364
  // Predicated region
  $region10: #{model_forward.4} parent=0 // pred_check
    _
  $region11: #{model_forward.4} parent=0 // pred_check_branch
    %398 = sbr.rel (0) target = $region13
  $region12: #{model_forward.4} parent=0 // pred_region
    _
  $region13: #{model_forward.4} parent=0 // pred_fallthru
    _
  // Predicated region
  $region14: #{model_forward.4} parent=0 // pred_check
    _
  $region15: #{model_forward.4} parent=0 // pred_check_branch
    %400 = sbr.rel (0) target = $region17
  $region16: #{model_forward.4} parent=0 // pred_region
    _
  $region17: #{model_forward.4} parent=0 // pred_fallthru
    _

// kernel: model_forward.5
$region0: #{model_forward.5}
  #allocation0 [shape = 'u32[]', space=smem, size = 0x4, offset = 0x4, fixed_abs, tag = 'smem constant byte address 0x4 - core index']
  #allocation1 [shape = 'u32[144,128]{1,0:T(1,128)}', space=vmem, size = 0x12000, scoped, tag = 'internal scratch']
  #allocation2 [shape = 'f32[32,128]{1,0:T(8,128)}', space=vmem, size = 0x4000, scoped, tag = 'scratch operand']
  %s0 = inlined_call_operand.vmem [shape: s8[128,128], index: 0, kind: input, shape index: {}]
  %s1 = inlined_call_operand.vmem [shape: bf16[128,256], index: 1, kind: input, shape index: {}, may-alias: {1,2}]
  %s2 = inlined_call_operand.vmem [shape: bf16[128,256], index: 2, kind: input, shape index: {}, may-alias: {1,2}]
  %s3 = inlined_call_operand.vmem [shape: f32[128,1], index: 3, kind: input, shape index: {}]
  %s4 = inlined_call_operand.vmem [shape: f32[1,128], index: 4, kind: input, shape index: {}]
  %s5 = inlined_call_operand.vmem [shape: bf16[128,128], index: 5, kind: output, shape index: {}]
  %s6 = sld [smem:[#allocation0]]
  $region143: #{model_forward.5} parent=0
    _
  %s8 = ssub.s32 1, %s6
  %s9 = scalar_select 0, %s8, %s6
  $region1: #{model_forward.5} parent=0
    #allocation3 [shape = 'u8[32768]{0}', space=vmem, size = 0x8000, scoped, tag = 'input window, operand 1, single buffered']
    #allocation4 [shape = 'u8[16384]{0}', space=vmem, size = 0x4000, scoped, tag = 'input window, operand 2']
    loop: start=0, step=1, limit=6
    $region2: #{model_forward.5} parent=1 // loop_pre_header
      _
    $region3: #{model_forward.5} parent=1 // loop_header
      %s11 = sphi 0, %s15
      %p12 = scmp.ge.s32.totalorder %s11, 6
      %s18 = sphi 0, %s30
      %s19 = sphi 0, %s26
      %s20 = sphi 0, %s18
      %s21 = sphi 0, %s19
      %s22 = sphi 0, %s20
      %s23 = sphi 0, %s21
      %s35 = sphi 0, %s37
      %s38 = sphi 0, %s35
      %s39 = sphi 0, %s38
      %s55 = sphi 0, %s39
      %s61 = sphi 0, %s63
      %s64 = sphi 0, %s61
      %s65 = sphi 0, %s64
      %s81 = sphi 0, %s65
      %s87 = sphi 0, %s89
      %s90 = sphi 0, %s87
      %s91 = sphi 0, %s90
      %s107 = sphi 0, %s91
      %s113 = sphi 0, %s115
      %s116 = sphi 0, %s113
      %s117 = sphi 0, %s116
      %s133 = sphi 0, %s117
      %s137 = sphi 0, %s137
      %s139 = sphi 0, %s137
      %s140 = sphi 0, %s139
      %s154 = sphi 0, %s140
      %s160 = sphi 0, %s162
      %s163 = sphi 0, %s160
      %s164 = sphi 0, %s163
      %s180 = sphi 0, %s164
    $region4: #{model_forward.5} parent=1 // loop_header_branch
      %14 = sbr.rel (%p12) target = $region8
    $region5: #{model_forward.5} parent=1 // loop_body
      %s16 = ssub.s32 %s11, 1
      %s17 = ssub.s32 %s11, 2
      %s24 = sadd.s32 1, %s19
      %p25 = scmp.ge.s32.totalorder %s24, 1
      %s26 = scalar_select %p25, 0, %s24
      %s27 = sadd.s32 1, %s18
      %s28 = scalar_select %p25, %s27, %s18
      %p29 = scmp.ge.s32.totalorder %s28, 4
      %s30 = scalar_select %p29, 0, %s28
      %s31 = ssub.s32 %s18, %s30
      %s32 = ssub.s32 %s19, %s26
      %s33 = sor.u32 %s31, %s32
      %p34 = scmp.eq.s32.totalorder %s33, 0
      %s36 = sadd.s32 %s35, 1
      %s37 = scalar_select %p34, %s35, %s36
      %p40 = pneg %p34
      %p41 = scmp.eq.s32.totalorder %s11, 3
      %p42 = por %p40, %p41
      %p43 = scmp.ne.s32.totalorder %s35, %s38
      %p44 = scmp.eq.s32.totalorder %s11, 0
      %p45 = por %p43, %p44
      %p46 = scmp.ne.s32.totalorder %s35, %s38
      %p47 = scmp.eq.s32.totalorder %s16, 3
      %p48 = por %p46, %p47
      %p49 = scmp.ne.s32.totalorder %s38, %s39
      %p50 = scmp.eq.s32.totalorder %s16, 0
      %p51 = por %p49, %p50
      %p52 = scmp.ne.s32.totalorder %s38, %s39
      %p53 = scmp.eq.s32.totalorder %s17, 3
      %p54 = por %p52, %p53
      %p56 = scmp.ne.s32.totalorder %s39, %s55
      %p57 = scmp.eq.s32.totalorder %s17, 0
      %p58 = por %p56, %p57
      %s59 = ssub.s32 %s19, %s26
      %p60 = scmp.eq.s32.totalorder %s59, 0
      %s62 = sadd.s32 %s61, 1
      %s63 = scalar_select %p60, %s61, %s62
      %p66 = pneg %p60
      %p67 = scmp.eq.s32.totalorder %s11, 3
      %p68 = por %p66, %p67
      %p69 = scmp.ne.s32.totalorder %s61, %s64
      %p70 = scmp.eq.s32.totalorder %s11, 0
      %p71 = por %p69, %p70
      %p72 = scmp.ne.s32.totalorder %s61, %s64
      %p73 = scmp.eq.s32.totalorder %s16, 3
      %p74 = por %p72, %p73
      %p75 = scmp.ne.s32.totalorder %s64, %s65
      %p76 = scmp.eq.s32.totalorder %s16, 0
      %p77 = por %p75, %p76
      %p78 = scmp.ne.s32.totalorder %s64, %s65
      %p79 = scmp.eq.s32.totalorder %s17, 3
      %p80 = por %p78, %p79
      %p82 = scmp.ne.s32.totalorder %s65, %s81
      %p83 = scmp.eq.s32.totalorder %s17, 0
      %p84 = por %p82, %p83
      %s85 = ssub.s32 %s18, %s30
      %p86 = scmp.eq.s32.totalorder %s85, 0
      %s88 = sadd.s32 %s87, 1
      %s89 = scalar_select %p86, %s87, %s88
      %p92 = pneg %p86
      %p93 = scmp.eq.s32.totalorder %s11, 3
      %p94 = por %p92, %p93
      %p95 = scmp.ne.s32.totalorder %s87, %s90
      %p96 = scmp.eq.s32.totalorder %s11, 0
      %p97 = por %p95, %p96
      %p98 = scmp.ne.s32.totalorder %s87, %s90
      %p99 = scmp.eq.s32.totalorder %s16, 3
      %p100 = por %p98, %p99
      %p101 = scmp.ne.s32.totalorder %s90, %s91
      %p102 = scmp.eq.s32.totalorder %s16, 0
      %p103 = por %p101, %p102
      %p104 = scmp.ne.s32.totalorder %s90, %s91
      %p105 = scmp.eq.s32.totalorder %s17, 3
      %p106 = por %p104, %p105
      %p108 = scmp.ne.s32.totalorder %s91, %s107
      %p109 = scmp.eq.s32.totalorder %s17, 0
      %p110 = por %p108, %p109
      %s111 = ssub.s32 %s18, %s30
      %p112 = scmp.eq.s32.totalorder %s111, 0
      %s114 = sadd.s32 %s113, 1
      %s115 = scalar_select %p112, %s113, %s114
      %p118 = pneg %p112
      %p119 = scmp.eq.s32.totalorder %s11, 3
      %p120 = por %p118, %p119
      %p121 = scmp.ne.s32.totalorder %s113, %s116
      %p122 = scmp.eq.s32.totalorder %s11, 0
      %p123 = por %p121, %p122
      %p124 = scmp.ne.s32.totalorder %s113, %s116
      %p125 = scmp.eq.s32.totalorder %s16, 3
      %p126 = por %p124, %p125
      %p127 = scmp.ne.s32.totalorder %s116, %s117
      %p128 = scmp.eq.s32.totalorder %s16, 0
      %p129 = por %p127, %p128
      %p130 = scmp.ne.s32.totalorder %s116, %s117
      %p131 = scmp.eq.s32.totalorder %s17, 3
      %p132 = por %p130, %p131
      %p134 = scmp.ne.s32.totalorder %s117, %s133
      %p135 = scmp.eq.s32.totalorder %s17, 0
      %p136 = por %p134, %p135
      %s138 = sadd.s32 %s137, 1
      %p141 = scmp.eq.s32.totalorder %s11, 3
      %p142 = scmp.ne.s32.totalorder %s137, %s139
      %p143 = scmp.eq.s32.totalorder %s11, 0
      %p144 = por %p142, %p143
      %p145 = scmp.ne.s32.totalorder %s137, %s139
      %p146 = scmp.eq.s32.totalorder %s16, 3
      %p147 = por %p145, %p146
      %p148 = scmp.ne.s32.totalorder %s139, %s140
      %p149 = scmp.eq.s32.totalorder %s16, 0
      %p150 = por %p148, %p149
      %p151 = scmp.ne.s32.totalorder %s139, %s140
      %p152 = scmp.eq.s32.totalorder %s17, 3
      %p153 = por %p151, %p152
      %p155 = scmp.ne.s32.totalorder %s140, %s154
      %p156 = scmp.eq.s32.totalorder %s17, 0
      %p157 = por %p155, %p156
      %s158 = ssub.s32 %s18, %s30
      %p159 = scmp.eq.s32.totalorder %s158, 0
      %s161 = sadd.s32 %s160, 1
      %s162 = scalar_select %p159, %s160, %s161
      %p165 = pneg %p159
      %p166 = scmp.eq.s32.totalorder %s11, 3
      %p167 = por %p165, %p166
      %p168 = scmp.ne.s32.totalorder %s160, %s163
      %p169 = scmp.eq.s32.totalorder %s11, 0
      %p170 = por %p168, %p169
      %p171 = scmp.ne.s32.totalorder %s160, %s163
      %p172 = scmp.eq.s32.totalorder %s16, 3
      %p173 = por %p171, %p172
      %p174 = scmp.ne.s32.totalorder %s163, %s164
      %p175 = scmp.eq.s32.totalorder %s16, 0
      %p176 = por %p174, %p175
      %p177 = scmp.ne.s32.totalorder %s163, %s164
      %p178 = scmp.eq.s32.totalorder %s17, 3
      %p179 = por %p177, %p178
      %p181 = scmp.ne.s32.totalorder %s164, %s180
      %p182 = scmp.eq.s32.totalorder %s17, 0
      %p183 = por %p181, %p182
      %p184 = scmp.le.s32.totalorder 1, %s11
      %p185 = scmp.lt.s32.totalorder %s11, 5
      %p186 = pnand %p184, %p185
      %p187 = pneg %p186
      // Predicated region
      $region9: #{model_forward.5} parent=5 // pred_check
        _
      $region10: #{model_forward.5} parent=5 // pred_check_branch
        %189 = sbr.rel (%p186) target = $region12
      $region11: #{model_forward.5} parent=5 // pred_region
        %s190 = ssub.s32 %s11, 1
        // Predicated region
        $region13: #{model_forward.5} parent=11 // pred_check
          %p191 = pneg %p77
        $region14: #{model_forward.5} parent=11 // pred_check_branch
          %193 = sbr.rel (%p191) target = $region16
        $region15: #{model_forward.5} parent=11 // pred_region
          %s194 = smul.u32 16, %s21
          %s195 = smul.addr %s194, 2
          %s196 = smul.addr %s195, 4
          %s197 = scalar_lea.vmem %s1, %s196
          // Predicated region
          $region17: #{model_forward.5} parent=15 // pred_check
            _
          $region18: #{model_forward.5} parent=15 // pred_check_branch
            %199 = sbr.rel (0) target = $region20
          $region19: #{model_forward.5} parent=15 // pred_region
            // Predicated region
            $region21: #{model_forward.5} parent=19 // pred_check
              _
            $region22: #{model_forward.5} parent=19 // pred_check_branch
              %201 = sbr.rel target = $region24
            $region23: #{model_forward.5} parent=19 // pred_region
              // Predicated region
              $region36: #{model_forward.5} parent=23 // pred_check
                _
              $region37: #{model_forward.5} parent=23 // pred_check_branch
                %246 = sbr.rel (0) target = $region39
              $region38: #{model_forward.5} parent=23 // pred_region
                loop: start=0, step=1, limit=1
                $region40: #{model_forward.5} parent=38 // loop_pre_header
                  _
                $region41: #{model_forward.5} parent=38 // loop_header
                  %s248 = sphi 0, %s252
                  %p249 = scmp.ge.s32.totalorder %s248, 1
                  %s253 = sphi %s197, %s197
                  %s254 = sphi [#allocation3], [#allocation3]
                $region42: #{model_forward.5} parent=38 // loop_header_branch
                  %251 = sbr.rel (%p249) target = $region46
                $region43: #{model_forward.5} parent=38 // loop_body
                  _
                $region44: #{model_forward.5} parent=38 // loop_footer
                  %s252 = sadd.s32 1, %s248
                $region45: #{model_forward.5} parent=38 // loop_footer_branch
                  %247 = sbr.rel target = $region41
                $region46: #{model_forward.5} parent=38 // loop_exit
                  _
                loop: start=0, step=1, limit=1
                $region47: #{model_forward.5} parent=38 // loop_pre_header
                  _
                $region48: #{model_forward.5} parent=38 // loop_header
                  %s257 = sphi 0, %s261
                  %p258 = scmp.ge.s32.totalorder %s257, 1
                  %s262 = sphi %s197, %s197
                  %s263 = sphi [#allocation3], [#allocation3]
                $region49: #{model_forward.5} parent=38 // loop_header_branch
                  %260 = sbr.rel (%p258) target = $region53
                $region50: #{model_forward.5} parent=38 // loop_body
                  %v264 = vld [vmem:[%s262] sm:$0xf]
                  %265 = vst [vmem:[%s263] sm:$0xf] %v264
                  %v266 = vld [vmem:[%s262 + $0x8] sm:$0xf]
                  %267 = vst [vmem:[%s263 + $0x4] sm:$0xf] %v266
                  %v268 = vld [vmem:[%s262 + $0x10] sm:$0xf]
                  %269 = vst [vmem:[%s263 + $0x8] sm:$0xf] %v268
                  %v270 = vld [vmem:[%s262 + $0x18] sm:$0xf]
                  %271 = vst [vmem:[%s263 + $0xc] sm:$0xf] %v270
                  %v272 = vld [vmem:[%s262 + $0x20] sm:$0xf]
                  %273 = vst [vmem:[%s263 + $0x10] sm:$0xf] %v272
                  %v274 = vld [vmem:[%s262 + $0x28] sm:$0xf]
                  %275 = vst [vmem:[%s263 + $0x14] sm:$0xf] %v274
                  %v276 = vld [vmem:[%s262 + $0x30] sm:$0xf]
                  %277 = vst [vmem:[%s263 + $0x18] sm:$0xf] %v276
                  %v278 = vld [vmem:[%s262 + $0x38] sm:$0xf]
                  %279 = vst [vmem:[%s263 + $0x1c] sm:$0xf] %v278
                  %v280 = vld [vmem:[%s262 + $0x40] sm:$0xf]
                  %281 = vst [vmem:[%s263 + $0x20] sm:$0xf] %v280
                  %v282 = vld [vmem:[%s262 + $0x48] sm:$0xf]
                  %283 = vst [vmem:[%s263 + $0x24] sm:$0xf] %v282
                  %v284 = vld [vmem:[%s262 + $0x50] sm:$0xf]
                  %285 = vst [vmem:[%s263 + $0x28] sm:$0xf] %v284
                  %v286 = vld [vmem:[%s262 + $0x58] sm:$0xf]
                  %287 = vst [vmem:[%s263 + $0x2c] sm:$0xf] %v286
                  %v288 = vld [vmem:[%s262 + $0x60] sm:$0xf]
                  %289 = vst [vmem:[%s263 + $0x30] sm:$0xf] %v288
                  %v290 = vld [vmem:[%s262 + $0x68] sm:$0xf]
                  %291 = vst [vmem:[%s263 + $0x34] sm:$0xf] %v290
                  %v292 = vld [vmem:[%s262 + $0x70] sm:$0xf]
                  %293 = vst [vmem:[%s263 + $0x38] sm:$0xf] %v292
                  %v294 = vld [vmem:[%s262 + $0x78] sm:$0xf]
                  %295 = vst [vmem:[%s263 + $0x3c] sm:$0xf] %v294
                $region51: #{model_forward.5} parent=38 // loop_footer
                  %s261 = sadd.s32 1, %s257
                $region52: #{model_forward.5} parent=38 // loop_footer_branch
                  %256 = sbr.rel target = $region48
                $region53: #{model_forward.5} parent=38 // loop_exit
                  _
              $region39: #{model_forward.5} parent=23 // pred_fallthru
                _
            $region24: #{model_forward.5} parent=19 // pred_fallthru
              _
            // Predicated region
            $region25: #{model_forward.5} parent=19 // pred_check
              _
            $region26: #{model_forward.5} parent=19 // pred_check_branch
              %203 = sbr.rel (0) target = $region28
            $region27: #{model_forward.5} parent=19 // pred_region
              loop: start=0, step=1, limit=1
              $region29: #{model_forward.5} parent=27 // loop_pre_header
                _
              $region30: #{model_forward.5} parent=27 // loop_header
                %s206 = sphi 0, %s210
                %p207 = scmp.ge.s32.totalorder %s206, 1
                %s211 = sphi %s197, %s197
                %s212 = sphi [#allocation3], [#allocation3]
              $region31: #{model_forward.5} parent=27 // loop_header_branch
                %209 = sbr.rel (%p207) target = $region35
              $region32: #{model_forward.5} parent=27 // loop_body
                %v213 = vld [vmem:[%s211] sm:$0xf]
                %214 = vst [vmem:[%s212] sm:$0xf] %v213
                %v215 = vld [vmem:[%s211 + $0x8] sm:$0xf]
                %216 = vst [vmem:[%s212 + $0x4] sm:$0xf] %v215
                %v217 = vld [vmem:[%s211 + $0x10] sm:$0xf]
                %218 = vst [vmem:[%s212 + $0x8] sm:$0xf] %v217
                %v219 = vld [vmem:[%s211 + $0x18] sm:$0xf]
                %220 = vst [vmem:[%s212 + $0xc] sm:$0xf] %v219
                %v221 = vld [vmem:[%s211 + $0x20] sm:$0xf]
                %222 = vst [vmem:[%s212 + $0x10] sm:$0xf] %v221
                %v223 = vld [vmem:[%s211 + $0x28] sm:$0xf]
                %224 = vst [vmem:[%s212 + $0x14] sm:$0xf] %v223
                %v225 = vld [vmem:[%s211 + $0x30] sm:$0xf]
                %226 = vst [vmem:[%s212 + $0x18] sm:$0xf] %v225
                %v227 = vld [vmem:[%s211 + $0x38] sm:$0xf]
                %228 = vst [vmem:[%s212 + $0x1c] sm:$0xf] %v227
                %v229 = vld [vmem:[%s211 + $0x40] sm:$0xf]
                %230 = vst [vmem:[%s212 + $0x20] sm:$0xf] %v229
                %v231 = vld [vmem:[%s211 + $0x48] sm:$0xf]
                %232 = vst [vmem:[%s212 + $0x24] sm:$0xf] %v231
                %v233 = vld [vmem:[%s211 + $0x50] sm:$0xf]
                %234 = vst [vmem:[%s212 + $0x28] sm:$0xf] %v233
                %v235 = vld [vmem:[%s211 + $0x58] sm:$0xf]
                %236 = vst [vmem:[%s212 + $0x2c] sm:$0xf] %v235
                %v237 = vld [vmem:[%s211 + $0x60] sm:$0xf]
                %238 = vst [vmem:[%s212 + $0x30] sm:$0xf] %v237
                %v239 = vld [vmem:[%s211 + $0x68] sm:$0xf]
                %240 = vst [vmem:[%s212 + $0x34] sm:$0xf] %v239
                %v241 = vld [vmem:[%s211 + $0x70] sm:$0xf]
                %242 = vst [vmem:[%s212 + $0x38] sm:$0xf] %v241
                %v243 = vld [vmem:[%s211 + $0x78] sm:$0xf]
                %244 = vst [vmem:[%s212 + $0x3c] sm:$0xf] %v243
              $region33: #{model_forward.5} parent=27 // loop_footer
                %s210 = sadd.s32 1, %s206
              $region34: #{model_forward.5} parent=27 // loop_footer_branch
                %205 = sbr.rel target = $region30
              $region35: #{model_forward.5} parent=27 // loop_exit
                _
            $region28: #{model_forward.5} parent=19 // pred_fallthru
              _
          $region20: #{model_forward.5} parent=15 // pred_fallthru
            _
          %296 = vnop
        $region16: #{model_forward.5} parent=11 // pred_fallthru
          _
        // Predicated region
        $region54: #{model_forward.5} parent=11 // pred_check
          %p297 = pneg %p150
        $region55: #{model_forward.5} parent=11 // pred_check_branch
          %299 = sbr.rel (%p297) target = $region57
        $region56: #{model_forward.5} parent=11 // pred_region
          _
        $region57: #{model_forward.5} parent=11 // pred_fallthru
          _
      $region12: #{model_forward.5} parent=5 // pred_fallthru
        _
      %p300 = scmp.lt.s32.totalorder %s11, 4
      // Predicated region
      $region58: #{model_forward.5} parent=5 // pred_check
        %p301 = pneg %p300
      $region59: #{model_forward.5} parent=5 // pred_check_branch
        %303 = sbr.rel (%p301) target = $region61
      $region60: #{model_forward.5} parent=5 // pred_region
        // Predicated region
        $region62: #{model_forward.5} parent=60 // pred_check
          %p304 = pneg %p45
        $region63: #{model_forward.5} parent=60 // pred_check_branch
          %306 = sbr.rel (%p304) target = $region65
        $region64: #{model_forward.5} parent=60 // pred_region
          %p307 = scmp.lt.s32.totalorder %s18, 3
          %s308 = scalar_select %p307, %s18, 3
          %p309 = scmp.lt.s32.totalorder %s19, 0
          %s310 = scalar_select %p309, %s19, 0
          %s311 = sadd.s32 %s310, %s308
          %s312 = smul.addr %s311, 8
          %s313 = scalar_lea.vmem %s0, %s312
        $region65: #{model_forward.5} parent=60 // pred_fallthru
          _
        // Predicated region
        $region66: #{model_forward.5} parent=60 // pred_check
          %p314 = pneg %p97
        $region67: #{model_forward.5} parent=60 // pred_check_branch
          %316 = sbr.rel (%p314) target = $region69
        $region68: #{model_forward.5} parent=60 // pred_region
          %s317 = sand.u32 %s87, 1
          %s318 = sand.u32 %s87, 1
          %s319 = smul.addr %s318, 16
          %s320 = scalar_lea.vmem [#allocation4], %s319
          %s321 = smul.u32 4, %s18
          %s322 = smul.addr %s321, 2
          %s323 = sadd.s32 1, %s322
          %s324 = smul.addr %s323, 4
          %s325 = scalar_lea.vmem %s2, %s324
          // Predicated region
          $region70: #{model_forward.5} parent=68 // pred_check
            _
          $region71: #{model_forward.5} parent=68 // pred_check_branch
            %327 = sbr.rel (0) target = $region73
          $region72: #{model_forward.5} parent=68 // pred_region
            // Predicated region
            $region74: #{model_forward.5} parent=72 // pred_check
              _
            $region75: #{model_forward.5} parent=72 // pred_check_branch
              %329 = sbr.rel target = $region77
            $region76: #{model_forward.5} parent=72 // pred_region
              // Predicated region
              $region89: #{model_forward.5} parent=76 // pred_check
                _
              $region90: #{model_forward.5} parent=76 // pred_check_branch
                %350 = sbr.rel (0) target = $region92
              $region91: #{model_forward.5} parent=76 // pred_region
                loop: start=0, step=1, limit=1
                $region93: #{model_forward.5} parent=91 // loop_pre_header
                  _
                $region94: #{model_forward.5} parent=91 // loop_header
                  %s352 = sphi 0, %s356
                  %p353 = scmp.ge.s32.totalorder %s352, 1
                  %s357 = sphi %s325, %s325
                  %s358 = sphi %s320, %s320
                $region95: #{model_forward.5} parent=91 // loop_header_branch
                  %355 = sbr.rel (%p353) target = $region99
                $region96: #{model_forward.5} parent=91 // loop_body
                  _
                $region97: #{model_forward.5} parent=91 // loop_footer
                  %s356 = sadd.s32 1, %s352
                $region98: #{model_forward.5} parent=91 // loop_footer_branch
                  %351 = sbr.rel target = $region94
                $region99: #{model_forward.5} parent=91 // loop_exit
                  _
                loop: start=0, step=1, limit=1
                $region100: #{model_forward.5} parent=91 // loop_pre_header
                  _
                $region101: #{model_forward.5} parent=91 // loop_header
                  %s361 = sphi 0, %s365
                  %p362 = scmp.ge.s32.totalorder %s361, 1
                  %s366 = sphi %s325, %s325
                  %s367 = sphi %s320, %s320
                $region102: #{model_forward.5} parent=91 // loop_header_branch
                  %364 = sbr.rel (%p362) target = $region106
                $region103: #{model_forward.5} parent=91 // loop_body
                  %v368 = vld [vmem:[%s366] sm:$0xf]
                  %369 = vst [vmem:[%s367] sm:$0xf] %v368
                  %v370 = vld [vmem:[%s366 + $0x8] sm:$0xf]
                  %371 = vst [vmem:[%s367 + $0x4] sm:$0xf] %v370
                  %v372 = vld [vmem:[%s366 + $0x10] sm:$0xf]
                  %373 = vst [vmem:[%s367 + $0x8] sm:$0xf] %v372
                  %v374 = vld [vmem:[%s366 + $0x18] sm:$0xf]
                  %375 = vst [vmem:[%s367 + $0xc] sm:$0xf] %v374
                $region104: #{model_forward.5} parent=91 // loop_footer
                  %s365 = sadd.s32 1, %s361
                $region105: #{model_forward.5} parent=91 // loop_footer_branch
                  %360 = sbr.rel target = $region101
                $region106: #{model_forward.5} parent=91 // loop_exit
                  _
              $region92: #{model_forward.5} parent=76 // pred_fallthru
                _
            $region77: #{model_forward.5} parent=72 // pred_fallthru
              _
            // Predicated region
            $region78: #{model_forward.5} parent=72 // pred_check
              _
            $region79: #{model_forward.5} parent=72 // pred_check_branch
              %331 = sbr.rel (0) target = $region81
            $region80: #{model_forward.5} parent=72 // pred_region
              loop: start=0, step=1, limit=1
              $region82: #{model_forward.5} parent=80 // loop_pre_header
                _
              $region83: #{model_forward.5} parent=80 // loop_header
                %s334 = sphi 0, %s338
                %p335 = scmp.ge.s32.totalorder %s334, 1
                %s339 = sphi %s325, %s325
                %s340 = sphi %s320, %s320
              $region84: #{model_forward.5} parent=80 // loop_header_branch
                %337 = sbr.rel (%p335) target = $region88
              $region85: #{model_forward.5} parent=80 // loop_body
                %v341 = vld [vmem:[%s339] sm:$0xf]
                %342 = vst [vmem:[%s340] sm:$0xf] %v341
                %v343 = vld [vmem:[%s339 + $0x8] sm:$0xf]
                %344 = vst [vmem:[%s340 + $0x4] sm:$0xf] %v343
                %v345 = vld [vmem:[%s339 + $0x10] sm:$0xf]
                %346 = vst [vmem:[%s340 + $0x8] sm:$0xf] %v345
                %v347 = vld [vmem:[%s339 + $0x18] sm:$0xf]
                %348 = vst [vmem:[%s340 + $0xc] sm:$0xf] %v347
              $region86: #{model_forward.5} parent=80 // loop_footer
                %s338 = sadd.s32 1, %s334
              $region87: #{model_forward.5} parent=80 // loop_footer_branch
                %333 = sbr.rel target = $region83
              $region88: #{model_forward.5} parent=80 // loop_exit
                _
            $region81: #{model_forward.5} parent=72 // pred_fallthru
              _
          $region73: #{model_forward.5} parent=68 // pred_fallthru
            _
          %376 = vnop
        $region69: #{model_forward.5} parent=60 // pred_fallthru
          _
        // Predicated region
        $region107: #{model_forward.5} parent=60 // pred_check
          %p377 = pneg %p123
        $region108: #{model_forward.5} parent=60 // pred_check_branch
          %379 = sbr.rel (%p377) target = $region110
        $region109: #{model_forward.5} parent=60 // pred_region
          %s380 = smul.u32 4, %s18
          %p381 = scmp.lt.s32.totalorder %s380, 15
          %s382 = scalar_select %p381, %s380, 15
          %s383 = smul.addr %s382, 8
          %s384 = scalar_lea.vmem %s3, %s383
          %s385 = smul.u32 4, %s18
        $region110: #{model_forward.5} parent=60 // pred_fallthru
          _
      $region61: #{model_forward.5} parent=5 // pred_fallthru
        _
      %p386 = scmp.le.s32.totalorder 1, %s11
      %p387 = scmp.lt.s32.totalorder %s11, 5
      %p388 = pnand %p386, %p387
      %p389 = pneg %p388
      // Predicated region
      $region111: #{model_forward.5} parent=5 // pred_check
        _
      $region112: #{model_forward.5} parent=5 // pred_check_branch
        %391 = sbr.rel (%p388) target = $region114
      $region113: #{model_forward.5} parent=5 // pred_region
        %s392 = ssub.s32 %s11, 1
        // Predicated region
        $region115: #{model_forward.5} parent=113 // pred_check
          %p393 = pneg %p77
        $region116: #{model_forward.5} parent=113 // pred_check_branch
          %395 = sbr.rel (%p393) target = $region118
        $region117: #{model_forward.5} parent=113 // pred_region
          _
        $region118: #{model_forward.5} parent=113 // pred_fallthru
          _
        %s396 = sand.u32 %s90, 1
        %s397 = sand.u32 %s90, 1
        %s398 = smul.addr %s397, 16
        %s399 = scalar_lea.vmem [#allocation4], %s398
        // Predicated region
        $region119: #{model_forward.5} parent=113 // pred_check
          %p400 = pneg %p103
        $region120: #{model_forward.5} parent=113 // pred_check_branch
          %402 = sbr.rel (%p400) target = $region122
        $region121: #{model_forward.5} parent=113 // pred_region
          _
        $region122: #{model_forward.5} parent=113 // pred_fallthru
          _
        %p403 = scmp.lt.s32.totalorder %s20, 3
        %s404 = scalar_select %p403, %s20, 3
        %p405 = scmp.lt.s32.totalorder %s21, 0
        %s406 = scalar_select %p405, %s21, 0
        %s407 = sadd.s32 %s406, %s404
        %s408 = smul.addr %s407, 8
        %s409 = scalar_lea.vmem %s0, %s408
        %p410 = pneg %p51
        %p411 = pneg %p48
        %p412 = pneg %p77
        %p413 = pneg %p74
        %s414 = sand.u32 %s90, 1
        %s415 = sand.u32 %s90, 1
        %s416 = smul.addr %s415, 16
        %s417 = scalar_lea.vmem [#allocation4], %s416
        %p418 = pneg %p103
        %p419 = pneg %p100
        %s420 = smul.u32 4, %s20
        %p421 = scmp.lt.s32.totalorder %s420, 15
        %s422 = scalar_select %p421, %s420, 15
        %s423 = smul.addr %s422, 8
        %s424 = scalar_lea.vmem %s3, %s423
        %p425 = pneg %p129
        %p426 = pneg %p126
        %p427 = pneg %p150
        %p428 = pneg %p147
        %p429 = pneg %p176
        %p430 = pneg %p173
        %s431 = smul.u32 4, %s20
        %p432 = scmp.lt.s32.totalorder %s431, 15
        %s433 = scalar_select %p432, %s431, 15
        %s434 = smul.addr %s433, 4
        %s435 = scalar_lea.vmem %s5, %s434
        %p436 = scmp.lt.s32.totalorder %s20, 3
        %s437 = scalar_select %p436, %s20, 3
        %p438 = scmp.lt.s32.totalorder %s21, 0
        %s439 = scalar_select %p438, %s21, 0
        %s440 = sadd.s32 %s439, %s437
        %s441 = smul.addr %s440, 8
        %s442 = scalar_lea.vmem %s0, %s441
        %s443 = smul.u32 16, %s21
        %s444 = smul.u32 4, %s20
        %s445 = smul.u32 4, %s20
        %p446 = scmp.lt.s32.totalorder %s445, 15
        %s447 = scalar_select %p446, %s445, 15
        %s448 = smul.addr %s447, 8
        %s449 = scalar_lea.vmem %s3, %s448
        %s450 = smul.u32 4, %s20
        %s451 = smul.u32 4, %s20
        %p452 = scmp.lt.s32.totalorder %s451, 15
        %s453 = scalar_select %p452, %s451, 15
        %s454 = smul.addr %s453, 4
        %s455 = scalar_lea.vmem %s5, %s454
        %s456 = smul.u32 4, %s20
        %p458 = scmp.eq.s32.totalorder %s21, 0
        // Predicated region
        $region123: #{model_forward.5} parent=113 // pred_check
          %p459 = pneg %p458
        $region124: #{model_forward.5} parent=113 // pred_check_branch
          %461 = sbr.rel (%p459) target = $region126
        $region125: #{model_forward.5} parent=113 // pred_region
          %462 = vst [vmem:[#allocation2] sm:$0xff] 0.0
          %463 = vst [vmem:[#allocation2 + $0x8] sm:$0xff] 0.0
          %464 = vst [vmem:[#allocation2 + $0x10] sm:$0xff] 0.0
          %465 = vst [vmem:[#allocation2 + $0x18] sm:$0xff] 0.0
        $region126: #{model_forward.5} parent=113 // pred_fallthru
          _
        %v466 = vld [vmem:[%s442] sm:$0xff]
        %v467 = vunpack.c.l.s8.bf16 %v466
        %v468 = vunpack.c.h.s8.bf16 %v466
        %v469 = vld [vmem:[#allocation2] sm:$0xff]
        %v470 = vld [vmem:[#allocation2 + $0x8] sm:$0xff]
        %v471 = vld [vmem:[#allocation2 + $0x10] sm:$0xff]
        %v472 = vld [vmem:[#allocation2 + $0x18] sm:$0xff]
        %v473 = vld [vmem:[#allocation3] sm:$0xf]
        %v474 = vld [vmem:[#allocation3 + $0x4] sm:$0xf]
        %v475 = vld [vmem:[#allocation3 + $0x8] sm:$0xf]
        %v476 = vld [vmem:[#allocation3 + $0xc] sm:$0xf]
        %v477 = vld [vmem:[#allocation3 + $0x10] sm:$0xf]
        %v478 = vld [vmem:[#allocation3 + $0x14] sm:$0xf]
        %v479 = vld [vmem:[#allocation3 + $0x18] sm:$0xf]
        %v480 = vld [vmem:[#allocation3 + $0x1c] sm:$0xf]
        %v481 = vld [vmem:[#allocation3 + $0x20] sm:$0xf]
        %v482 = vld [vmem:[#allocation3 + $0x24] sm:$0xf]
        %v483 = vld [vmem:[#allocation3 + $0x28] sm:$0xf]
        %v484 = vld [vmem:[#allocation3 + $0x2c] sm:$0xf]
        %v485 = vld [vmem:[#allocation3 + $0x30] sm:$0xf]
        %v486 = vld [vmem:[#allocation3 + $0x34] sm:$0xf]
        %v487 = vld [vmem:[#allocation3 + $0x38] sm:$0xf]
        %v488 = vld [vmem:[#allocation3 + $0x3c] sm:$0xf]
        %v505 = vunpack.c.l.b16 %v473
        %v506 = vunpack.c.l.b16 %v474
        %v507 = vunpack.c.l.b16 %v475
        %v508 = vunpack.c.l.b16 %v476
        %v509 = vunpack.c.l.b16 %v477
        %v510 = vunpack.c.l.b16 %v478
        %v511 = vunpack.c.l.b16 %v479
        %v512 = vunpack.c.l.b16 %v480
        %v513 = vunpack.c.l.b16 %v481
        %v514 = vunpack.c.l.b16 %v482
        %v515 = vunpack.c.l.b16 %v483
        %v516 = vunpack.c.l.b16 %v484
        %v517 = vunpack.c.l.b16 %v485
        %v518 = vunpack.c.l.b16 %v486
        %v519 = vunpack.c.l.b16 %v487
        %v520 = vunpack.c.l.b16 %v488
        %v521 = vpack.c.b16 %v506, %v505
        %v522 = vpack.c.b16 %v508, %v507
        %v523 = vpack.c.b16 %v510, %v509
        %v524 = vpack.c.b16 %v512, %v511
        %v525 = vpack.c.b16 %v514, %v513
        %v526 = vpack.c.b16 %v516, %v515
        %v527 = vpack.c.b16 %v518, %v517
        %v528 = vpack.c.b16 %v520, %v519
        %537 = vmatprep.subr.bf16.mxu0 0
        %538 = vmatpush1.bf16.msra.mxu0 %v521
        %539 = vmatprep.subr.bf16.mxu0 0
        %540 = vmatpush1.bf16.msra.mxu0 %v522
        %541 = vmatprep.subr.bf16.mxu0 0
        %542 = vmatpush1.bf16.msra.mxu0 %v523
        %543 = vmatprep.subr.bf16.mxu0 0
        %544 = vmatpush1.bf16.msra.mxu0 %v524
        %545 = vmatprep.subr.bf16.mxu0 0
        %546 = vmatpush1.bf16.msra.mxu0 %v525
        %547 = vmatprep.subr.bf16.mxu0 0
        %548 = vmatpush1.bf16.msra.mxu0 %v526
        %549 = vmatprep.subr.bf16.mxu0 0
        %550 = vmatpush1.bf16.msra.mxu0 %v527
        %551 = vmatprep.subr.bf16.mxu0 0
        %552 = vmatpush1.bf16.msra.mxu0 %v528
        %553 = vmatprep.subr.bf16.mxu0 0
        %554 = vmatpush1.bf16.msra.mxu0 0
        %555 = vmatprep.subr.bf16.mxu0 0
        %556 = vmatpush1.bf16.msra.mxu0 0
        %557 = vmatprep.subr.bf16.mxu0 0
        %558 = vmatpush1.bf16.msra.mxu0 0
        %559 = vmatprep.subr.bf16.mxu0 0
        %560 = vmatpush1.bf16.msra.mxu0 0
        %561 = vmatprep.subr.bf16.mxu0 0
        %562 = vmatpush1.bf16.msra.mxu0 0
        %563 = vmatprep.subr.bf16.mxu0 0
        %564 = vmatpush1.bf16.msra.mxu0 0
        %565 = vmatprep.subr.bf16.mxu0 0
        %566 = vmatpush1.bf16.msra.mxu0 0
        %567 = vmatprep.subr.bf16.mxu0 0
        %568 = vmatpush1.bf16.msra.mxu0 0
        %569 = vmatprep.mubr.bf16.mxu0 0
        %570 = vmatmul.mubr.bf16.gmra.mrb[0].mxu0 %v467
        %v571 = vpop.f32.mrb[0].mxu0
        %v572 = vadd.f32 0.0, %v571
        %v573 = vpop.f32.mrb[0].mxu0
        %v574 = vpop.f32.mrb[0].mxu0
        %v575 = vadd.f32 0.0, %v574
        %v576 = vpop.f32.mrb[0].mxu0
        %577 = vmatprep.mubr.bf16.mxu0 0
        %578 = vmatmul.mubr.bf16.gmra.mrb[0].mxu0 %v468
        %v579 = vpop.f32.mrb[0].mxu0
        %v580 = vadd.f32 0.0, %v579
        %v581 = vpop.f32.mrb[0].mxu0
        %v582 = vpop.f32.mrb[0].mxu0
        %v583 = vadd.f32 0.0, %v582
        %v584 = vpop.f32.mrb[0].mxu0
        %585 = vdwg.mxu0
        %v586 = vadd.f32 %v469, %v572
        %v587 = vadd.f32 %v470, %v575
        %v588 = vadd.f32 %v471, %v580
        %v589 = vadd.f32 %v472, %v583
        %590 = vst [vmem:[#allocation2] sm:$0xff] %v586
        %591 = vst [vmem:[#allocation2 + $0x8] sm:$0xff] %v587
        %592 = vst [vmem:[#allocation2 + $0x10] sm:$0xff] %v588
        %593 = vst [vmem:[#allocation2 + $0x18] sm:$0xff] %v589
        // Predicated region
        $region127: #{model_forward.5} parent=113 // pred_check
          %p594 = pneg %p458
        $region128: #{model_forward.5} parent=113 // pred_check_branch
          %596 = sbr.rel (%p594) target = $region130
        $region129: #{model_forward.5} parent=113 // pred_region
          %v597 = vld [vmem:[#allocation2] sm:$0xff]
          %v598 = vld [vmem:[#allocation2 + $0x8] sm:$0xff]
          %v599 = vld [vmem:[#allocation2 + $0x10] sm:$0xff]
          %v600 = vld [vmem:[#allocation2 + $0x18] sm:$0xff]
          %v601 = vld [vmem:[%s449] sm:$0xff]
          %v602 = vld [vmem:[%s449 + $0x8] sm:$0xff]
          %v603 = vld [vmem:[%s449 + $0x10] sm:$0xff]
          %v604 = vld [vmem:[%s449 + $0x18] sm:$0xff]
          %606 = vset.pattern.permute.xlu0 0
          %607 = vperm.xlu0 %606, %v601
          %v608 = vpop.permute.xlu0 %607
          %611 = vset.pattern.permute.xlu0 0
          %612 = vperm.xlu0 %611, %v602
          %v613 = vpop.permute.xlu0 %612
          %616 = vset.pattern.permute.xlu0 0
          %617 = vperm.xlu0 %616, %v603
          %v618 = vpop.permute.xlu0 %617
          %621 = vset.pattern.permute.xlu0 0
          %622 = vperm.xlu0 %621, %v604
          %v623 = vpop.permute.xlu0 %622
          %v625 = vmul.f32 %v597, %v608
          %v626 = vmul.f32 %v598, %v613
          %v627 = vmul.f32 %v599, %v618
          %v628 = vmul.f32 %v600, %v623
          %v629 = vld [vmem:[%s399] sm:$0xf]
          %v630 = vld [vmem:[%s399 + $0x4] sm:$0xf]
          %v631 = vld [vmem:[%s399 + $0x8] sm:$0xf]
          %v632 = vld [vmem:[%s399 + $0xc] sm:$0xf]
          %v633 = vunpack.c.l.bf16 %v629
          %v634 = vunpack.c.l.bf16 %v630
          %v635 = vunpack.c.l.bf16 %v631
          %v636 = vunpack.c.l.bf16 %v632
          %v637 = vadd.f32 %v625, %v633
          %v638 = vadd.f32 %v626, %v634
          %v639 = vadd.f32 %v627, %v635
          %v640 = vadd.f32 %v628, %v636
          %v641 = vld [vmem:[%s4] sm:$0x1]
          %v643 = vlaneseq
          %v644 = vshrl.u32 %v643, 7
          %v645 = vsub.s32 0, %v644
          %v646 = vrot.slane %v641, %v645
          %v648 = vadd.f32 %v637, %v646
          %v649 = vadd.f32 %v638, %v646
          %v650 = vadd.f32 %v639, %v646
          %v651 = vadd.f32 %v640, %v646
          %v652 = vmax.f32 %v648, 0.0
          %v653 = vmax.f32 %v649, 0.0
          %v654 = vmax.f32 %v650, 0.0
          %v655 = vmax.f32 %v651, 0.0
          %v656 = vpack.c.bf16 %v653, %v652
          %v657 = vpack.c.bf16 %v655, %v654
          %v660 = vunpack.c.l.b16 %v656
          %v661 = vunpack.c.h.b16 %v656
          %v662 = vunpack.c.l.b16 %v657
          %v663 = vunpack.c.h.b16 %v657
          %v664 = vpack.c.b16 %v660, %v660
          %v665 = vpack.c.b16 %v661, %v661
          %v666 = vpack.c.b16 %v662, %v662
          %v667 = vpack.c.b16 %v663, %v663
          %672 = vst [vmem:[%s455] sm:$0xf] %v664
          %673 = vst [vmem:[%s455 + $0x4] sm:$0xf] %v665
          %674 = vst [vmem:[%s455 + $0x8] sm:$0xf] %v666
          %675 = vst [vmem:[%s455 + $0xc] sm:$0xf] %v667
        $region130: #{model_forward.5} parent=113 // pred_fallthru
          _
        %s676 = smul.u32 4, %s20
        %p677 = scmp.lt.s32.totalorder %s676, 15
        %s678 = scalar_select %p677, %s676, 15
        %s679 = smul.addr %s678, 4
        %s680 = scalar_lea.vmem %s5, %s679
        // Predicated region
        $region131: #{model_forward.5} parent=113 // pred_check
          %p681 = pneg %p173
        $region132: #{model_forward.5} parent=113 // pred_check_branch
          %683 = sbr.rel (%p681) target = $region134
        $region133: #{model_forward.5} parent=113 // pred_region
          %s684 = smul.u32 4, %s20
        $region134: #{model_forward.5} parent=113 // pred_fallthru
          _
      $region114: #{model_forward.5} parent=5 // pred_fallthru
        _
      %p685 = scmp.le.s32.totalorder 2, %s11
      // Predicated region
      $region135: #{model_forward.5} parent=5 // pred_check
        %p686 = pneg %p685
      $region136: #{model_forward.5} parent=5 // pred_check_branch
        %688 = sbr.rel (%p686) target = $region138
      $region137: #{model_forward.5} parent=5 // pred_region
        %s689 = ssub.s32 %s11, 2
        // Predicated region
        $region139: #{model_forward.5} parent=137 // pred_check
          %p690 = pneg %p179
        $region140: #{model_forward.5} parent=137 // pred_check_branch
          %692 = sbr.rel (%p690) target = $region142
        $region141: #{model_forward.5} parent=137 // pred_region
          %s693 = smul.u32 4, %s22
          %p694 = scmp.lt.s32.totalorder %s693, 15
          %s695 = scalar_select %p694, %s693, 15
          %s696 = smul.addr %s695, 4
          %s697 = scalar_lea.vmem %s5, %s696
        $region142: #{model_forward.5} parent=137 // pred_fallthru
          _
      $region138: #{model_forward.5} parent=5 // pred_fallthru
        _
    $region6: #{model_forward.5} parent=1 // loop_footer
      %s15 = sadd.s32 1, %s11
    $region7: #{model_forward.5} parent=1 // loop_footer_branch
      %10 = sbr.rel target = $region3
    $region8: #{model_forward.5} parent=1 // loop_exit
      _

// kernel: model_forward.7
$region0: #{model_forward.7}
  #allocation0 [shape = 'u32[]', space=smem, size = 0x4, offset = 0x4, fixed_abs, tag = 'smem constant byte address 0x4 - core index']
  #allocation1 [shape = 'u32[144,128]{1,0:T(1,128)}', space=vmem, size = 0x12000, scoped, tag = 'internal scratch']
  #allocation2 [shape = 'f32[32,128]{1,0:T(8,128)}', space=vmem, size = 0x4000, scoped, tag = 'scratch operand']
  %s0 = inlined_call_operand.vmem [shape: s8[32,128], index: 0, kind: input, shape index: {}]
  %s1 = inlined_call_operand.vmem [shape: bf16[128,256], index: 1, kind: input, shape index: {}, may-alias: {1,2}]
  %s2 = inlined_call_operand.vmem [shape: bf16[128,256], index: 2, kind: input, shape index: {}, may-alias: {1,2}]
  %s3 = inlined_call_operand.vmem [shape: f32[32,1], index: 3, kind: input, shape index: {}]
  %s4 = inlined_call_operand.vmem [shape: f32[1,128], index: 4, kind: input, shape index: {}]
  %s5 = inlined_call_operand.vmem [shape: f32[32,128], index: 5, kind: output, shape index: {}]
  %s6 = sld [smem:[#allocation0]]
  $region120: #{model_forward.7} parent=0
    _
  %s8 = ssub.s32 1, %s6
  %s9 = scalar_select 0, %s8, %s6
  $region1: #{model_forward.7} parent=0
    #allocation3 [shape = 'u8[32768]{0}', space=vmem, size = 0x8000, scoped, tag = 'input window, operand 1, single buffered']
    #allocation4 [shape = 'u8[8192]{0}', space=vmem, size = 0x2000, scoped, tag = 'input window, operand 2, single buffered']
    // Predicated region
    $region2: #{model_forward.7} parent=1 // pred_check
      _
    $region3: #{model_forward.7} parent=1 // pred_check_branch
      %11 = sbr.rel (0) target = $region5
    $region4: #{model_forward.7} parent=1 // pred_region
      _
    $region5: #{model_forward.7} parent=1 // pred_fallthru
      _
    // Predicated region
    $region6: #{model_forward.7} parent=1 // pred_check
      _
    $region7: #{model_forward.7} parent=1 // pred_check_branch
      %13 = sbr.rel (0) target = $region9
    $region8: #{model_forward.7} parent=1 // pred_region
      // Predicated region
      $region10: #{model_forward.7} parent=8 // pred_check
        _
      $region11: #{model_forward.7} parent=8 // pred_check_branch
        %15 = sbr.rel (0) target = $region13
      $region12: #{model_forward.7} parent=8 // pred_region
        // Predicated region
        $region14: #{model_forward.7} parent=12 // pred_check
          _
        $region15: #{model_forward.7} parent=12 // pred_check_branch
          %17 = sbr.rel target = $region17
        $region16: #{model_forward.7} parent=12 // pred_region
          // Predicated region
          $region29: #{model_forward.7} parent=16 // pred_check
            _
          $region30: #{model_forward.7} parent=16 // pred_check_branch
            %62 = sbr.rel (0) target = $region32
          $region31: #{model_forward.7} parent=16 // pred_region
            loop: start=0, step=1, limit=1
            $region33: #{model_forward.7} parent=31 // loop_pre_header
              _
            $region34: #{model_forward.7} parent=31 // loop_header
              %s64 = sphi 0, %s68
              %p65 = scmp.ge.s32.totalorder %s64, 1
              %s69 = sphi %s1, %s1
              %s70 = sphi [#allocation3], [#allocation3]
            $region35: #{model_forward.7} parent=31 // loop_header_branch
              %67 = sbr.rel (%p65) target = $region39
            $region36: #{model_forward.7} parent=31 // loop_body
              _
            $region37: #{model_forward.7} parent=31 // loop_footer
              %s68 = sadd.s32 1, %s64
            $region38: #{model_forward.7} parent=31 // loop_footer_branch
              %63 = sbr.rel target = $region34
            $region39: #{model_forward.7} parent=31 // loop_exit
              _
            loop: start=0, step=1, limit=1
            $region40: #{model_forward.7} parent=31 // loop_pre_header
              _
            $region41: #{model_forward.7} parent=31 // loop_header
              %s73 = sphi 0, %s77
              %p74 = scmp.ge.s32.totalorder %s73, 1
              %s78 = sphi %s1, %s1
              %s79 = sphi [#allocation3], [#allocation3]
            $region42: #{model_forward.7} parent=31 // loop_header_branch
              %76 = sbr.rel (%p74) target = $region46
            $region43: #{model_forward.7} parent=31 // loop_body
              %v80 = vld [vmem:[%s78] sm:$0xf]
              %81 = vst [vmem:[%s79] sm:$0xf] %v80
              %v82 = vld [vmem:[%s78 + $0x8] sm:$0xf]
              %83 = vst [vmem:[%s79 + $0x4] sm:$0xf] %v82
              %v84 = vld [vmem:[%s78 + $0x10] sm:$0xf]
              %85 = vst [vmem:[%s79 + $0x8] sm:$0xf] %v84
              %v86 = vld [vmem:[%s78 + $0x18] sm:$0xf]
              %87 = vst [vmem:[%s79 + $0xc] sm:$0xf] %v86
              %v88 = vld [vmem:[%s78 + $0x20] sm:$0xf]
              %89 = vst [vmem:[%s79 + $0x10] sm:$0xf] %v88
              %v90 = vld [vmem:[%s78 + $0x28] sm:$0xf]
              %91 = vst [vmem:[%s79 + $0x14] sm:$0xf] %v90
              %v92 = vld [vmem:[%s78 + $0x30] sm:$0xf]
              %93 = vst [vmem:[%s79 + $0x18] sm:$0xf] %v92
              %v94 = vld [vmem:[%s78 + $0x38] sm:$0xf]
              %95 = vst [vmem:[%s79 + $0x1c] sm:$0xf] %v94
              %v96 = vld [vmem:[%s78 + $0x40] sm:$0xf]
              %97 = vst [vmem:[%s79 + $0x20] sm:$0xf] %v96
              %v98 = vld [vmem:[%s78 + $0x48] sm:$0xf]
              %99 = vst [vmem:[%s79 + $0x24] sm:$0xf] %v98
              %v100 = vld [vmem:[%s78 + $0x50] sm:$0xf]
              %101 = vst [vmem:[%s79 + $0x28] sm:$0xf] %v100
              %v102 = vld [vmem:[%s78 + $0x58] sm:$0xf]
              %103 = vst [vmem:[%s79 + $0x2c] sm:$0xf] %v102
              %v104 = vld [vmem:[%s78 + $0x60] sm:$0xf]
              %105 = vst [vmem:[%s79 + $0x30] sm:$0xf] %v104
              %v106 = vld [vmem:[%s78 + $0x68] sm:$0xf]
              %107 = vst [vmem:[%s79 + $0x34] sm:$0xf] %v106
              %v108 = vld [vmem:[%s78 + $0x70] sm:$0xf]
              %109 = vst [vmem:[%s79 + $0x38] sm:$0xf] %v108
              %v110 = vld [vmem:[%s78 + $0x78] sm:$0xf]
              %111 = vst [vmem:[%s79 + $0x3c] sm:$0xf] %v110
            $region44: #{model_forward.7} parent=31 // loop_footer
              %s77 = sadd.s32 1, %s73
            $region45: #{model_forward.7} parent=31 // loop_footer_branch
              %72 = sbr.rel target = $region41
            $region46: #{model_forward.7} parent=31 // loop_exit
              _
          $region32: #{model_forward.7} parent=16 // pred_fallthru
            _
        $region17: #{model_forward.7} parent=12 // pred_fallthru
          _
        // Predicated region
        $region18: #{model_forward.7} parent=12 // pred_check
          _
        $region19: #{model_forward.7} parent=12 // pred_check_branch
          %19 = sbr.rel (0) target = $region21
        $region20: #{model_forward.7} parent=12 // pred_region
          loop: start=0, step=1, limit=1
          $region22: #{model_forward.7} parent=20 // loop_pre_header
            _
          $region23: #{model_forward.7} parent=20 // loop_header
            %s22 = sphi 0, %s26
            %p23 = scmp.ge.s32.totalorder %s22, 1
            %s27 = sphi %s1, %s1
            %s28 = sphi [#allocation3], [#allocation3]
          $region24: #{model_forward.7} parent=20 // loop_header_branch
            %25 = sbr.rel (%p23) target = $region28
          $region25: #{model_forward.7} parent=20 // loop_body
            %v29 = vld [vmem:[%s27] sm:$0xf]
            %30 = vst [vmem:[%s28] sm:$0xf] %v29
            %v31 = vld [vmem:[%s27 + $0x8] sm:$0xf]
            %32 = vst [vmem:[%s28 + $0x4] sm:$0xf] %v31
            %v33 = vld [vmem:[%s27 + $0x10] sm:$0xf]
            %34 = vst [vmem:[%s28 + $0x8] sm:$0xf] %v33
            %v35 = vld [vmem:[%s27 + $0x18] sm:$0xf]
            %36 = vst [vmem:[%s28 + $0xc] sm:$0xf] %v35
            %v37 = vld [vmem:[%s27 + $0x20] sm:$0xf]
            %38 = vst [vmem:[%s28 + $0x10] sm:$0xf] %v37
            %v39 = vld [vmem:[%s27 + $0x28] sm:$0xf]
            %40 = vst [vmem:[%s28 + $0x14] sm:$0xf] %v39
            %v41 = vld [vmem:[%s27 + $0x30] sm:$0xf]
            %42 = vst [vmem:[%s28 + $0x18] sm:$0xf] %v41
            %v43 = vld [vmem:[%s27 + $0x38] sm:$0xf]
            %44 = vst [vmem:[%s28 + $0x1c] sm:$0xf] %v43
            %v45 = vld [vmem:[%s27 + $0x40] sm:$0xf]
            %46 = vst [vmem:[%s28 + $0x20] sm:$0xf] %v45
            %v47 = vld [vmem:[%s27 + $0x48] sm:$0xf]
            %48 = vst [vmem:[%s28 + $0x24] sm:$0xf] %v47
            %v49 = vld [vmem:[%s27 + $0x50] sm:$0xf]
            %50 = vst [vmem:[%s28 + $0x28] sm:$0xf] %v49
            %v51 = vld [vmem:[%s27 + $0x58] sm:$0xf]
            %52 = vst [vmem:[%s28 + $0x2c] sm:$0xf] %v51
            %v53 = vld [vmem:[%s27 + $0x60] sm:$0xf]
            %54 = vst [vmem:[%s28 + $0x30] sm:$0xf] %v53
            %v55 = vld [vmem:[%s27 + $0x68] sm:$0xf]
            %56 = vst [vmem:[%s28 + $0x34] sm:$0xf] %v55
            %v57 = vld [vmem:[%s27 + $0x70] sm:$0xf]
            %58 = vst [vmem:[%s28 + $0x38] sm:$0xf] %v57
            %v59 = vld [vmem:[%s27 + $0x78] sm:$0xf]
            %60 = vst [vmem:[%s28 + $0x3c] sm:$0xf] %v59
          $region26: #{model_forward.7} parent=20 // loop_footer
            %s26 = sadd.s32 1, %s22
          $region27: #{model_forward.7} parent=20 // loop_footer_branch
            %21 = sbr.rel target = $region23
          $region28: #{model_forward.7} parent=20 // loop_exit
            _
        $region21: #{model_forward.7} parent=12 // pred_fallthru
          _
      $region13: #{model_forward.7} parent=8 // pred_fallthru
        _
      %112 = vnop
    $region9: #{model_forward.7} parent=1 // pred_fallthru
      _
    // Predicated region
    $region47: #{model_forward.7} parent=1 // pred_check
      _
    $region48: #{model_forward.7} parent=1 // pred_check_branch
      %114 = sbr.rel (0) target = $region50
    $region49: #{model_forward.7} parent=1 // pred_region
      %s115 = scalar_lea.vmem %s2, 4
      // Predicated region
      $region51: #{model_forward.7} parent=49 // pred_check
        _
      $region52: #{model_forward.7} parent=49 // pred_check_branch
        %117 = sbr.rel (0) target = $region54
      $region53: #{model_forward.7} parent=49 // pred_region
        // Predicated region
        $region55: #{model_forward.7} parent=53 // pred_check
          _
        $region56: #{model_forward.7} parent=53 // pred_check_branch
          %119 = sbr.rel target = $region58
        $region57: #{model_forward.7} parent=53 // pred_region
          // Predicated region
          $region70: #{model_forward.7} parent=57 // pred_check
            _
          $region71: #{model_forward.7} parent=57 // pred_check_branch
            %140 = sbr.rel (0) target = $region73
          $region72: #{model_forward.7} parent=57 // pred_region
            loop: start=0, step=1, limit=1
            $region74: #{model_forward.7} parent=72 // loop_pre_header
              _
            $region75: #{model_forward.7} parent=72 // loop_header
              %s142 = sphi 0, %s146
              %p143 = scmp.ge.s32.totalorder %s142, 1
              %s147 = sphi %s115, %s115
              %s148 = sphi [#allocation4], [#allocation4]
            $region76: #{model_forward.7} parent=72 // loop_header_branch
              %145 = sbr.rel (%p143) target = $region80
            $region77: #{model_forward.7} parent=72 // loop_body
              _
            $region78: #{model_forward.7} parent=72 // loop_footer
              %s146 = sadd.s32 1, %s142
            $region79: #{model_forward.7} parent=72 // loop_footer_branch
              %141 = sbr.rel target = $region75
            $region80: #{model_forward.7} parent=72 // loop_exit
              _
            loop: start=0, step=1, limit=1
            $region81: #{model_forward.7} parent=72 // loop_pre_header
              _
            $region82: #{model_forward.7} parent=72 // loop_header
              %s151 = sphi 0, %s155
              %p152 = scmp.ge.s32.totalorder %s151, 1
              %s156 = sphi %s115, %s115
              %s157 = sphi [#allocation4], [#allocation4]
            $region83: #{model_forward.7} parent=72 // loop_header_branch
              %154 = sbr.rel (%p152) target = $region87
            $region84: #{model_forward.7} parent=72 // loop_body
              %v158 = vld [vmem:[%s156] sm:$0xf]
              %159 = vst [vmem:[%s157] sm:$0xf] %v158
              %v160 = vld [vmem:[%s156 + $0x8] sm:$0xf]
              %161 = vst [vmem:[%s157 + $0x4] sm:$0xf] %v160
              %v162 = vld [vmem:[%s156 + $0x10] sm:$0xf]
              %163 = vst [vmem:[%s157 + $0x8] sm:$0xf] %v162
              %v164 = vld [vmem:[%s156 + $0x18] sm:$0xf]
              %165 = vst [vmem:[%s157 + $0xc] sm:$0xf] %v164
            $region85: #{model_forward.7} parent=72 // loop_footer
              %s155 = sadd.s32 1, %s151
            $region86: #{model_forward.7} parent=72 // loop_footer_branch
              %150 = sbr.rel target = $region82
            $region87: #{model_forward.7} parent=72 // loop_exit
              _
          $region73: #{model_forward.7} parent=57 // pred_fallthru
            _
        $region58: #{model_forward.7} parent=53 // pred_fallthru
          _
        // Predicated region
        $region59: #{model_forward.7} parent=53 // pred_check
          _
        $region60: #{model_forward.7} parent=53 // pred_check_branch
          %121 = sbr.rel (0) target = $region62
        $region61: #{model_forward.7} parent=53 // pred_region
          loop: start=0, step=1, limit=1
          $region63: #{model_forward.7} parent=61 // loop_pre_header
            _
          $region64: #{model_forward.7} parent=61 // loop_header
            %s124 = sphi 0, %s128
            %p125 = scmp.ge.s32.totalorder %s124, 1
            %s129 = sphi %s115, %s115
            %s130 = sphi [#allocation4], [#allocation4]
          $region65: #{model_forward.7} parent=61 // loop_header_branch
            %127 = sbr.rel (%p125) target = $region69
          $region66: #{model_forward.7} parent=61 // loop_body
            %v131 = vld [vmem:[%s129] sm:$0xf]
            %132 = vst [vmem:[%s130] sm:$0xf] %v131
            %v133 = vld [vmem:[%s129 + $0x8] sm:$0xf]
            %134 = vst [vmem:[%s130 + $0x4] sm:$0xf] %v133
            %v135 = vld [vmem:[%s129 + $0x10] sm:$0xf]
            %136 = vst [vmem:[%s130 + $0x8] sm:$0xf] %v135
            %v137 = vld [vmem:[%s129 + $0x18] sm:$0xf]
            %138 = vst [vmem:[%s130 + $0xc] sm:$0xf] %v137
          $region67: #{model_forward.7} parent=61 // loop_footer
            %s128 = sadd.s32 1, %s124
          $region68: #{model_forward.7} parent=61 // loop_footer_branch
            %123 = sbr.rel target = $region64
          $region69: #{model_forward.7} parent=61 // loop_exit
            _
        $region62: #{model_forward.7} parent=53 // pred_fallthru
          _
      $region54: #{model_forward.7} parent=49 // pred_fallthru
        _
      %166 = vnop
    $region50: #{model_forward.7} parent=1 // pred_fallthru
      _
    // Predicated region
    $region88: #{model_forward.7} parent=1 // pred_check
      _
    $region89: #{model_forward.7} parent=1 // pred_check_branch
      %168 = sbr.rel (0) target = $region91
    $region90: #{model_forward.7} parent=1 // pred_region
      _
    $region91: #{model_forward.7} parent=1 // pred_fallthru
      _
    // Predicated region
    $region92: #{model_forward.7} parent=1 // pred_check
      _
    $region93: #{model_forward.7} parent=1 // pred_check_branch
      %170 = sbr.rel (0) target = $region95
    $region94: #{model_forward.7} parent=1 // pred_region
      _
    $region95: #{model_forward.7} parent=1 // pred_fallthru
      _
    // Predicated region
    $region96: #{model_forward.7} parent=1 // pred_check
      _
    $region97: #{model_forward.7} parent=1 // pred_check_branch
      %172 = sbr.rel (0) target = $region99
    $region98: #{model_forward.7} parent=1 // pred_region
      _
    $region99: #{model_forward.7} parent=1 // pred_fallthru
      _
    // Predicated region
    $region100: #{model_forward.7} parent=1 // pred_check
      _
    $region101: #{model_forward.7} parent=1 // pred_check_branch
      %174 = sbr.rel (0) target = $region103
    $region102: #{model_forward.7} parent=1 // pred_region
      _
    $region103: #{model_forward.7} parent=1 // pred_fallthru
      _
    %p176 = scmp.eq.s32.totalorder 0, 0
    // Predicated region
    $region104: #{model_forward.7} parent=1 // pred_check
      %p177 = pneg %p176
    $region105: #{model_forward.7} parent=1 // pred_check_branch
      %179 = sbr.rel (%p177) target = $region107
    $region106: #{model_forward.7} parent=1 // pred_region
      %180 = vst [vmem:[#allocation2] sm:$0xff] 0.0
      %181 = vst [vmem:[#allocation2 + $0x8] sm:$0xff] 0.0
      %182 = vst [vmem:[#allocation2 + $0x10] sm:$0xff] 0.0
      %183 = vst [vmem:[#allocation2 + $0x18] sm:$0xff] 0.0
    $region107: #{model_forward.7} parent=1 // pred_fallthru
      _
    %v184 = vld [vmem:[%s0] sm:$0xff]
    %v185 = vunpack.c.l.s8.bf16 %v184
    %v186 = vunpack.c.h.s8.bf16 %v184
    %v187 = vld [vmem:[#allocation2] sm:$0xff]
    %v188 = vld [vmem:[#allocation2 + $0x8] sm:$0xff]
    %v189 = vld [vmem:[#allocation2 + $0x10] sm:$0xff]
    %v190 = vld [vmem:[#allocation2 + $0x18] sm:$0xff]
    %v191 = vld [vmem:[#allocation3] sm:$0xf]
    %v192 = vld [vmem:[#allocation3 + $0x4] sm:$0xf]
    %v193 = vld [vmem:[#allocation3 + $0x8] sm:$0xf]
    %v194 = vld [vmem:[#allocation3 + $0xc] sm:$0xf]
    %v195 = vld [vmem:[#allocation3 + $0x10] sm:$0xf]
    %v196 = vld [vmem:[#allocation3 + $0x14] sm:$0xf]
    %v197 = vld [vmem:[#allocation3 + $0x18] sm:$0xf]
    %v198 = vld [vmem:[#allocation3 + $0x1c] sm:$0xf]
    %v199 = vld [vmem:[#allocation3 + $0x20] sm:$0xf]
    %v200 = vld [vmem:[#allocation3 + $0x24] sm:$0xf]
    %v201 = vld [vmem:[#allocation3 + $0x28] sm:$0xf]
    %v202 = vld [vmem:[#allocation3 + $0x2c] sm:$0xf]
    %v203 = vld [vmem:[#allocation3 + $0x30] sm:$0xf]
    %v204 = vld [vmem:[#allocation3 + $0x34] sm:$0xf]
    %v205 = vld [vmem:[#allocation3 + $0x38] sm:$0xf]
    %v206 = vld [vmem:[#allocation3 + $0x3c] sm:$0xf]
    %v223 = vunpack.c.l.b16 %v191
    %v224 = vunpack.c.l.b16 %v192
    %v225 = vunpack.c.l.b16 %v193
    %v226 = vunpack.c.l.b16 %v194
    %v227 = vunpack.c.l.b16 %v195
    %v228 = vunpack.c.l.b16 %v196
    %v229 = vunpack.c.l.b16 %v197
    %v230 = vunpack.c.l.b16 %v198
    %v231 = vunpack.c.l.b16 %v199
    %v232 = vunpack.c.l.b16 %v200
    %v233 = vunpack.c.l.b16 %v201
    %v234 = vunpack.c.l.b16 %v202
    %v235 = vunpack.c.l.b16 %v203
    %v236 = vunpack.c.l.b16 %v204
    %v237 = vunpack.c.l.b16 %v205
    %v238 = vunpack.c.l.b16 %v206
    %v239 = vpack.c.b16 %v224, %v223
    %v240 = vpack.c.b16 %v226, %v225
    %v241 = vpack.c.b16 %v228, %v227
    %v242 = vpack.c.b16 %v230, %v229
    %v243 = vpack.c.b16 %v232, %v231
    %v244 = vpack.c.b16 %v234, %v233
    %v245 = vpack.c.b16 %v236, %v235
    %v246 = vpack.c.b16 %v238, %v237
    %255 = vmatprep.subr.bf16.mxu0 0
    %256 = vmatpush1.bf16.msra.mxu0 %v239
    %257 = vmatprep.subr.bf16.mxu0 0
    %258 = vmatpush1.bf16.msra.mxu0 %v240
    %259 = vmatprep.subr.bf16.mxu0 0
    %260 = vmatpush1.bf16.msra.mxu0 %v241
    %261 = vmatprep.subr.bf16.mxu0 0
    %262 = vmatpush1.bf16.msra.mxu0 %v242
    %263 = vmatprep.subr.bf16.mxu0 0
    %264 = vmatpush1.bf16.msra.mxu0 %v243
    %265 = vmatprep.subr.bf16.mxu0 0
    %266 = vmatpush1.bf16.msra.mxu0 %v244
    %267 = vmatprep.subr.bf16.mxu0 0
    %268 = vmatpush1.bf16.msra.mxu0 %v245
    %269 = vmatprep.subr.bf16.mxu0 0
    %270 = vmatpush1.bf16.msra.mxu0 %v246
    %271 = vmatprep.subr.bf16.mxu0 0
    %272 = vmatpush1.bf16.msra.mxu0 0
    %273 = vmatprep.subr.bf16.mxu0 0
    %274 = vmatpush1.bf16.msra.mxu0 0
    %275 = vmatprep.subr.bf16.mxu0 0
    %276 = vmatpush1.bf16.msra.mxu0 0
    %277 = vmatprep.subr.bf16.mxu0 0
    %278 = vmatpush1.bf16.msra.mxu0 0
    %279 = vmatprep.subr.bf16.mxu0 0
    %280 = vmatpush1.bf16.msra.mxu0 0
    %281 = vmatprep.subr.bf16.mxu0 0
    %282 = vmatpush1.bf16.msra.mxu0 0
    %283 = vmatprep.subr.bf16.mxu0 0
    %284 = vmatpush1.bf16.msra.mxu0 0
    %285 = vmatprep.subr.bf16.mxu0 0
    %286 = vmatpush1.bf16.msra.mxu0 0
    %287 = vmatprep.mubr.bf16.mxu0 0
    %288 = vmatmul.mubr.bf16.gmra.mrb[0].mxu0 %v185
    %v289 = vpop.f32.mrb[0].mxu0
    %v290 = vadd.f32 0.0, %v289
    %v291 = vpop.f32.mrb[0].mxu0
    %v292 = vpop.f32.mrb[0].mxu0
    %v293 = vadd.f32 0.0, %v292
    %v294 = vpop.f32.mrb[0].mxu0
    %295 = vmatprep.mubr.bf16.mxu0 0
    %296 = vmatmul.mubr.bf16.gmra.mrb[0].mxu0 %v186
    %v297 = vpop.f32.mrb[0].mxu0
    %v298 = vadd.f32 0.0, %v297
    %v299 = vpop.f32.mrb[0].mxu0
    %v300 = vpop.f32.mrb[0].mxu0
    %v301 = vadd.f32 0.0, %v300
    %v302 = vpop.f32.mrb[0].mxu0
    %303 = vdwg.mxu0
    %v304 = vadd.f32 %v187, %v290
    %v305 = vadd.f32 %v188, %v293
    %v306 = vadd.f32 %v189, %v298
    %v307 = vadd.f32 %v190, %v301
    %308 = vst [vmem:[#allocation2] sm:$0xff] %v304
    %309 = vst [vmem:[#allocation2 + $0x8] sm:$0xff] %v305
    %310 = vst [vmem:[#allocation2 + $0x10] sm:$0xff] %v306
    %311 = vst [vmem:[#allocation2 + $0x18] sm:$0xff] %v307
    // Predicated region
    $region108: #{model_forward.7} parent=1 // pred_check
      %p312 = pneg %p176
    $region109: #{model_forward.7} parent=1 // pred_check_branch
      %314 = sbr.rel (%p312) target = $region111
    $region110: #{model_forward.7} parent=1 // pred_region
      %v315 = vld [vmem:[#allocation2] sm:$0xff]
      %v316 = vld [vmem:[#allocation2 + $0x8] sm:$0xff]
      %v317 = vld [vmem:[#allocation2 + $0x10] sm:$0xff]
      %v318 = vld [vmem:[#allocation2 + $0x18] sm:$0xff]
      %v319 = vld [vmem:[%s3] sm:$0xff]
      %v320 = vld [vmem:[%s3 + $0x8] sm:$0xff]
      %v321 = vld [vmem:[%s3 + $0x10] sm:$0xff]
      %v322 = vld [vmem:[%s3 + $0x18] sm:$0xff]
      %324 = vset.pattern.permute.xlu0 0
      %325 = vperm.xlu0 %324, %v319
      %v326 = vpop.permute.xlu0 %325
      %329 = vset.pattern.permute.xlu0 0
      %330 = vperm.xlu0 %329, %v320
      %v331 = vpop.permute.xlu0 %330
      %334 = vset.pattern.permute.xlu0 0
      %335 = vperm.xlu0 %334, %v321
      %v336 = vpop.permute.xlu0 %335
      %339 = vset.pattern.permute.xlu0 0
      %340 = vperm.xlu0 %339, %v322
      %v341 = vpop.permute.xlu0 %340
      %v343 = vmul.f32 %v315, %v326
      %v344 = vmul.f32 %v316, %v331
      %v345 = vmul.f32 %v317, %v336
      %v346 = vmul.f32 %v318, %v341
      %v347 = vld [vmem:[#allocation4] sm:$0xf]
      %v348 = vld [vmem:[#allocation4 + $0x4] sm:$0xf]
      %v349 = vld [vmem:[#allocation4 + $0x8] sm:$0xf]
      %v350 = vld [vmem:[#allocation4 + $0xc] sm:$0xf]
      %v351 = vunpack.c.l.bf16 %v347
      %v352 = vunpack.c.l.bf16 %v348
      %v353 = vunpack.c.l.bf16 %v349
      %v354 = vunpack.c.l.bf16 %v350
      %v355 = vadd.f32 %v343, %v351
      %v356 = vadd.f32 %v344, %v352
      %v357 = vadd.f32 %v345, %v353
      %v358 = vadd.f32 %v346, %v354
      %v359 = vld [vmem:[%s4] sm:$0x1]
      %v361 = vlaneseq
      %v362 = vshrl.u32 %v361, 7
      %v363 = vsub.s32 0, %v362
      %v364 = vrot.slane %v359, %v363
      %v366 = vadd.f32 %v355, %v364
      %v367 = vadd.f32 %v356, %v364
      %v368 = vadd.f32 %v357, %v364
      %v369 = vadd.f32 %v358, %v364
      %370 = vst [vmem:[%s5] sm:$0xff] %v366
      %371 = vst [vmem:[%s5 + $0x8] sm:$0xff] %v367
      %372 = vst [vmem:[%s5 + $0x10] sm:$0xff] %v368
      %373 = vst [vmem:[%s5 + $0x18] sm:$0xff] %v369
    $region111: #{model_forward.7} parent=1 // pred_fallthru
      _
    // Predicated region
    $region112: #{model_forward.7} parent=1 // pred_check
      _
    $region113: #{model_forward.7} parent=1 // pred_check_branch
      %375 = sbr.rel (0) target = $region115
    $region114: #{model_forward.7} parent=1 // pred_region
      _
    $region115: #{model_forward.7} parent=1 // pred_fallthru
      _
    // Predicated region
    $region116: #{model_forward.7} parent=1 // pred_check
      _
    $region117: #{model_forward.7} parent=1 // pred_check_branch
      %377 = sbr.rel (0) target = $region119
    $region118: #{model_forward.7} parent=1 // pred_region
      _
    $region119: #{model_forward.7} parent=1 // pred_fallthru
      _

</llo_original>
